<compile_context>
chip_gen: v7x
topology: tpu7x:2x2x1
jax: 0.10.0
libtpu: 0.0.40
codegen_flags: <defaults>
</compile_context>

<pallas_src>
import functools

import jax
import jax.numpy as jnp
import numpy as np
from jax.experimental import pallas as pl
from jax.experimental.pallas import tpu as pltpu

COMPUTE_DTYPE = jnp.bfloat16      # MXU operand / per-point elementwise dtype
STATE_LANE_PAD = 128              # state head output padded to a full lane tile


def _round_up(x, m):
    return (x + m - 1) // m * m


# ------------------------------- Pallas kernel -------------------------------

def _pointnet_state_kernel(
    pc_ref, st_ref,
    w1_ref, b1_ref, w2_ref, b2_ref, w3_ref, b3_ref,
    wg_ref, bg_ref, ws1_ref, bs1_ref, ws2_ref, bs2_ref,
    out_ref, acc_ref, *, n_points,
):
    """Grid = (batch_tiles, point_chunks).

    acc_ref: (tb, 256) f32 running max of the raw layer-3 matmul (bias/ReLU
    hoisted to the epilogue).  out_ref: (tb, 1, 384) f32 slab.
    """
    n = pl.program_id(1)
    last = pl.num_programs(1) - 1
    tb, tn, cin = pc_ref.shape
    d3 = w3_ref.shape[1]
    d_pn = wg_ref.shape[1]

    @pl.when(n == 0)
    def _init():
        acc_ref[...] = jnp.full(acc_ref.shape, -jnp.inf, dtype=acc_ref.dtype)

    def mm(a, w_ref):
        return jnp.dot(a, w_ref[...], preferred_element_type=jnp.float32)

    # Shared per-point MLP (Conv1d(k=1) + folded eval-BN).  MXU accumulates in
    # f32; bias add / ReLU run in bf16 (operands of the next dot are bf16
    # anyway).  Collapsing (tb, tn) is layout-trivial since tn % 8 == 0.
    x = pc_ref[...].reshape(tb * tn, cin).astype(COMPUTE_DTYPE)
    h = jnp.maximum(mm(x, w1_ref).astype(COMPUTE_DTYPE) + b1_ref[...], 0)
    h = jnp.maximum(mm(h, w2_ref).astype(COMPUTE_DTYPE) + b2_ref[...], 0)
    # Layer-3 bias + ReLU are hoisted to the epilogue (max commutes with both).
    s3 = mm(h, w3_ref).reshape(tb, tn, d3)                       # f32

    if n_points % tn != 0:
        # Ragged tail: rows past n_points hold unspecified data -> mask to -inf
        # before the running max (jnp.where discards even NaN garbage).
        pt = jax.lax.broadcasted_iota(jnp.int32, (tn, 1), 0)
        valid = (n * tn + pt) < n_points                         # (tn, 1)
        s3 = jnp.where(valid[None, :, :], s3, -jnp.inf)

    acc_ref[...] = jnp.maximum(acc_ref[...], jnp.max(s3, axis=1))

    @pl.when(n == last)
    def _finalize():
        # Hoisted layer-3 bias + ReLU, then global Linear + folded BN + ReLU.
        g = jnp.maximum(acc_ref[...] + b3_ref[...], 0.0)                    # (tb, 256)
        gf = jnp.maximum(mm(g.astype(COMPUTE_DTYPE), wg_ref) + bg_ref[...], 0.0)
        # Tiny state MLP: Linear + ReLU + Linear (final layer lane-padded to 128).
        s = st_ref[...].reshape(tb, -1).astype(COMPUTE_DTYPE)
        sf = jnp.maximum(mm(s, ws1_ref) + bs1_ref[...], 0.0)
        sf = mm(sf.astype(COMPUTE_DTYPE), ws2_ref) + bs2_ref[...]           # (tb, 128)
        # Two 128-aligned unmasked stores into the single output slab.
        out_ref[:, :, :d_pn] = gf.reshape(tb, 1, d_pn)
        out_ref[:, :, d_pn:] = sf.reshape(tb, 1, sf.shape[-1])


# --------------------------------- wrapper -----------------------------------

def _choose_tiles(B, N, target_rows=4096):
    """Pick (tb, tn): ~target_rows point-rows per grid step, tb | B, and a
    batch grid axis of extent >= 2 whenever B >= 2 (v7x megacore)."""
    if N >= target_rows:
        n_chunks = -(-N // target_rows)
        tn = _round_up(-(-N // n_chunks), 128)
        return 1, tn
    tn = _round_up(max(N, 1), 8)
    cap = max(1, target_rows // tn)
    if B >= 2:
        cap = min(cap, max(1, B // 2))
    tb = 1
    for cand in range(min(cap, B), 0, -1):
        if B % cand == 0:
            tb = cand
            break
    return tb, tn


def pointnet_state_extractor(pc, state, params):
    """pc: (B, N, pc_dim) f32, state: (B, S) f32 -> (B, 256 + 64) f32."""
    B, N, C = pc.shape
    S = state.shape[-1]
    d_pn = params["wg"].shape[1]                    # 256
    d_st = params["ws2"].shape[1]                   # 64
    d_st_pad = _round_up(d_st, STATE_LANE_PAD)      # 128
    d_slab = d_pn + d_st_pad                        # 384 (lane-aligned)

    tb, tn = _choose_tiles(B, N)
    n_chunks = pl.cdiv(N, tn)
    grid = (B // tb, n_chunks)

    # Device-side params: bf16 weights for the MXU, bf16 hot-loop biases,
    # f32 epilogue biases; state head zero-padded to 128 output lanes.
    bf = COMPUTE_DTYPE
    dp = {
        "w1": params["w1"].astype(bf), "b1": params["b1"].astype(bf),
        "w2": params["w2"].astype(bf), "b2": params["b2"].astype(bf),
        "w3": params["w3"].astype(bf), "b3": params["b3"],
        "wg": params["wg"].astype(bf), "bg": params["bg"],
        "ws1": params["ws1"].astype(bf), "bs1": params["bs1"],
        "ws2": jnp.pad(params["ws2"], ((0, 0), (0, d_st_pad - d_st))).astype(bf),
        "bs2": jnp.pad(params["bs2"], ((0, 0), (0, d_st_pad - d_st))),
    }
    state3 = state[:, None, :]                      # (B, 1, S): 3-D so tb can be 1

    def const(arr):
        shp = arr.shape
        return pl.BlockSpec(shp, lambda b, n: (0,) * len(shp))

    in_specs = [
        pl.BlockSpec((tb, tn, C), lambda b, n: (b, n, 0)),      # pc, native 3-ch
        pl.BlockSpec((tb, 1, S), lambda b, n: (b, 0, 0)),       # state
        const(dp["w1"]), const(dp["b1"]), const(dp["w2"]), const(dp["b2"]),
        const(dp["w3"]), const(dp["b3"]), const(dp["wg"]), const(dp["bg"]),
        const(dp["ws1"]), const(dp["bs1"]), const(dp["ws2"]), const(dp["bs2"]),
    ]
    out_specs = pl.BlockSpec((tb, 1, d_slab), lambda b, n: (b, 0, 0))

    l1, l2 = params["w1"].shape[1], params["w2"].shape[1]
    flops = int(2 * B * n_chunks * tn * (C * l1 + l1 * l2 + l2 * d_pn)
                + 2 * B * (d_pn * d_pn + S * l1 + l1 * d_st))
    bytes_accessed = int(pc.size * 4 + state.size * 4
                         + sum(int(v.size) * v.dtype.itemsize for v in dp.values())
                         + B * d_slab * 4)

    kernel = functools.partial(_pointnet_state_kernel, n_points=N)
    out = pl.pallas_call(
        kernel,
        out_shape=jax.ShapeDtypeStruct((B, 1, d_slab), jnp.float32),
        grid_spec=pltpu.PrefetchScalarGridSpec(
            num_scalar_prefetch=0,
            grid=grid,
            in_specs=in_specs,
            out_specs=out_specs,
            scratch_shapes=[pltpu.VMEM((tb, d_pn), jnp.float32)],
        ),
        compiler_params=pltpu.CompilerParams(
            dimension_semantics=("parallel", "arbitrary"),
            vmem_limit_bytes=32 * 1024 * 1024,      # working set ~10-15 MiB; OK on v5e/v6e/v7x
        ),
        cost_estimate=pl.CostEstimate(
            flops=flops, transcendentals=0, bytes_accessed=bytes_accessed),
    )(pc, state3,
      dp["w1"], dp["b1"], dp["w2"], dp["b2"], dp["w3"], dp["b3"],
      dp["wg"], dp["bg"], dp["ws1"], dp["bs1"], dp["ws2"], dp["bs2"])

    # torch.cat([pn_feat, state_feat], dim=-1): one slice of the slab.
    return out[:, 0, :d_pn + d_st]


# ----------------------------- parameter setup -------------------------------

def _fold_bn(w, b, gamma, beta, mean, var, eps=1e-5):
    """Fold eval-mode BatchNorm1d into a preceding linear / conv1d(k=1).
    w: (out, in) PyTorch convention, b: (out,).  Exact algebraic identity."""
    scale = gamma / jnp.sqrt(var + eps)
    return w * scale[:, None], (b - mean) * scale + beta


def init_params(key, pc_dim, state_dim,
                local_channels=(64, 128, 256), global_channels=(256,),
                state_mlp_size=(64, 64)):
    """Kernel-layout params in f32: weights (in, out), biases (1, out), BN folded.
    (bf16 casting / lane padding happens once at the pallas_call boundary.)"""
    keys = iter(jax.random.split(key, 64))

    def linear(in_dim, out_dim):
        w = 0.1 * jax.random.normal(next(keys), (out_dim, in_dim), jnp.float32)
        b = 0.1 * jax.random.normal(next(keys), (out_dim,), jnp.float32)
        return w, b

    def bn(dim):
        gamma = 0.5 + jax.random.uniform(next(keys), (dim,), jnp.float32)
        beta = 0.1 * jax.random.normal(next(keys), (dim,), jnp.float32)
        mean = 0.1 * jax.random.normal(next(keys), (dim,), jnp.float32)
        var = 0.5 + jax.random.uniform(next(keys), (dim,), jnp.float32)
        return gamma, beta, mean, var

    def pack(w, b):
        return jnp.asarray(w).T, jnp.asarray(b)[None, :]        # (in,out), (1,out)

    params = {}
    dims = (pc_dim,) + tuple(local_channels)
    for i in range(len(local_channels)):          # Conv1d(k=1) + BN stack
        w, b = linear(dims[i], dims[i + 1])
        w, b = _fold_bn(w, b, *bn(dims[i + 1]))
        params[f"w{i+1}"], params[f"b{i+1}"] = pack(w, b)

    w, b = linear(local_channels[-1], global_channels[-1])      # global Linear + BN
    w, b = _fold_bn(w, b, *bn(global_channels[-1]))
    params["wg"], params["bg"] = pack(w, b)

    hidden, out_dim = state_mlp_size[0], state_mlp_size[-1]     # state MLP (no BN)
    w, b = linear(state_dim, hidden)
    params["ws1"], params["bs1"] = pack(w, b)
    w, b = linear(hidden, out_dim)
    params["ws2"], params["bs2"] = pack(w, b)
    return params


# -------------------------------- reference ----------------------------------

def reference_forward(pc, state, p):
    """Pure f32 reference matching the PyTorch eval-mode forward."""
    B, N, C = pc.shape
    x = pc.reshape(B * N, C)
    h = jax.nn.relu(x @ p["w1"] + p["b1"])
    h = jax.nn.relu(h @ p["w2"] + p["b2"])
    h = jax.nn.relu(h @ p["w3"] + p["b3"])
    g = jnp.max(h.reshape(B, N, -1), axis=1)
    gf = jax.nn.relu(g @ p["wg"] + p["bg"])
    sf = jax.nn.relu(state @ p["ws1"] + p["bs1"])
    sf = sf @ p["ws2"] + p["bs2"]
    return jnp.concatenate([gf, sf], axis=-1)


if __name__ == "__main__":
    key = jax.random.PRNGKey(0)
    k_pc, k_state, k_param = jax.random.split(key, 3)

    B, N, PC_DIM, STATE_DIM = 2, 16, 3, 8
    pc = jax.random.normal(k_pc, (B, N, PC_DIM), jnp.float32)        # obs[pc_key]
    state = jax.random.normal(k_state, (B, STATE_DIM), jnp.float32)  # obs['state']

    params = init_params(k_param, PC_DIM, STATE_DIM)

    out = jax.block_until_ready(pointnet_state_extractor(pc, state, params))
    ref = jax.block_until_ready(reference_forward(pc, state, params))

    assert out.shape == (B, 256 + 64), out.shape
    # Kernel uses bf16 MXU operands; reference is true f32 PyTorch semantics.
    np.testing.assert_allclose(np.asarray(out), np.asarray(ref), rtol=3e-2, atol=3e-2)

    print("KERNEL_OK")
</pallas_src>

<mosaic_0001>
module attributes {stable_mosaic.version = 11 : i64} {
  func.func @_pointnet_state_kernel(%arg0: i32, %arg1: i32, %arg2: memref<1x16x3xf32, #tpu.memory_space<vmem>>, %arg3: memref<1x1x8xf32, #tpu.memory_space<vmem>>, %arg4: memref<3x64xbf16, #tpu.memory_space<vmem>>, %arg5: memref<1x64xbf16, #tpu.memory_space<vmem>>, %arg6: memref<64x128xbf16, #tpu.memory_space<vmem>>, %arg7: memref<1x128xbf16, #tpu.memory_space<vmem>>, %arg8: memref<128x256xbf16, #tpu.memory_space<vmem>>, %arg9: memref<1x256xf32, #tpu.memory_space<vmem>>, %arg10: memref<256x256xbf16, #tpu.memory_space<vmem>>, %arg11: memref<1x256xf32, #tpu.memory_space<vmem>>, %arg12: memref<8x64xbf16, #tpu.memory_space<vmem>>, %arg13: memref<1x64xf32, #tpu.memory_space<vmem>>, %arg14: memref<64x128xbf16, #tpu.memory_space<vmem>>, %arg15: memref<1x128xf32, #tpu.memory_space<vmem>>, %arg16: memref<1x1x384xf32, #tpu.memory_space<vmem>>, %arg17: memref<1x256xf32, #tpu.memory_space<vmem>>) attributes {dimension_semantics = [#tpu.dimension_semantics<parallel>, #tpu.dimension_semantics<arbitrary>], iteration_bounds = array<i64: 2, 1>, scalar_prefetch = 0 : i64, scratch_operands = 1 : i64, tpu.core_type = #tpu.core_type<tc>, window_params = [{transform_indices = @transform_0, window_bounds = array<i64: 1, 16, 3>}, {transform_indices = @transform_1, window_bounds = array<i64: 1, 1, 8>}, {pipeline_mode = #tpu.pipeline_mode<synchronous>, transform_indices = @transform_2, window_bounds = array<i64: 3, 64>}, {pipeline_mode = #tpu.pipeline_mode<synchronous>, transform_indices = @transform_3, window_bounds = array<i64: 1, 64>}, {pipeline_mode = #tpu.pipeline_mode<synchronous>, transform_indices = @transform_4, window_bounds = array<i64: 64, 128>}, {pipeline_mode = #tpu.pipeline_mode<synchronous>, transform_indices = @transform_5, window_bounds = array<i64: 1, 128>}, {pipeline_mode = #tpu.pipeline_mode<synchronous>, transform_indices = @transform_6, window_bounds = array<i64: 128, 256>}, {pipeline_mode = #tpu.pipeline_mode<synchronous>, transform_indices = @transform_7, window_bounds = array<i64: 1, 256>}, {pipeline_mode = #tpu.pipeline_mode<synchronous>, transform_indices = @transform_8, window_bounds = array<i64: 256, 256>}, {pipeline_mode = #tpu.pipeline_mode<synchronous>, transform_indices = @transform_9, window_bounds = array<i64: 1, 256>}, {pipeline_mode = #tpu.pipeline_mode<synchronous>, transform_indices = @transform_10, window_bounds = array<i64: 8, 64>}, {pipeline_mode = #tpu.pipeline_mode<synchronous>, transform_indices = @transform_11, window_bounds = array<i64: 1, 64>}, {pipeline_mode = #tpu.pipeline_mode<synchronous>, transform_indices = @transform_12, window_bounds = array<i64: 64, 128>}, {pipeline_mode = #tpu.pipeline_mode<synchronous>, transform_indices = @transform_13, window_bounds = array<i64: 1, 128>}, {transform_indices = @transform_14, window_bounds = array<i64: 1, 1, 384>}]} {
    %c0_i32 = arith.constant 0 : i32
    %0 = arith.cmpi eq, %arg1, %c0_i32 : i32
    %1 = arith.extui %0 : i1 to i32
    %c0_i32_0 = arith.constant 0 : i32
    %2 = arith.cmpi ne, %1, %c0_i32_0 : i32
    scf.if %2 {
      %cst_24 = arith.constant 0xFF800000 : f32
      %32 = vector.broadcast %cst_24 : f32 to vector<1x256xf32>
      %c0_25 = arith.constant 0 : index
      %c0_26 = arith.constant 0 : index
      %33 = vector.load %arg17[%c0_25, %c0_26] : memref<1x256xf32, #tpu.memory_space<vmem>>, vector<1x256xf32>
      tpu.vector_store %arg17[%c0_25, %c0_26], %32 {strides = array<i32>} : memref<1x256xf32, #tpu.memory_space<vmem>>, vector<1x256xf32>,
    } else {
    }
    %c0 = arith.constant 0 : index
    %c0_1 = arith.constant 0 : index
    %c0_2 = arith.constant 0 : index
    %3 = vector.load %arg2[%c0, %c0_1, %c0_2] : memref<1x16x3xf32, #tpu.memory_space<vmem>>, vector<1x16x3xf32>
    %4 = vector.shape_cast %3 : vector<1x16x3xf32> to vector<16x3xf32>
    %5 = arith.truncf %4 : vector<16x3xf32> to vector<16x3xbf16>
    %c0_3 = arith.constant 0 : index
    %c0_4 = arith.constant 0 : index
    %6 = vector.load %arg4[%c0_3, %c0_4] : memref<3x64xbf16, #tpu.memory_space<vmem>>, vector<3x64xbf16>
    %cst = arith.constant dense<0.000000e+00> : vector<16x64xf32>
    %7 = tpu.matmul %5, %6, %cst {dimension_numbers = #tpu.dot_dimension_numbers<[1], [0], [0], [1], [0, 0, 1, 1], [], []>} : vector<16x3xbf16>, vector<3x64xbf16>, vector<16x64xf32> -> vector<16x64xf32>
    %8 = arith.truncf %7 : vector<16x64xf32> to vector<16x64xbf16>
    %c0_5 = arith.constant 0 : index
    %c0_6 = arith.constant 0 : index
    %9 = vector.load %arg5[%c0_5, %c0_6] : memref<1x64xbf16, #tpu.memory_space<vmem>>, vector<1x64xbf16>
    %10 = vector.broadcast %9 : vector<1x64xbf16> to vector<16x64xbf16>
    %11 = arith.addf %8, %10 : vector<16x64xbf16>
    %cst_7 = arith.constant 0.000000e+00 : bf16
    %12 = vector.broadcast %cst_7 : bf16 to vector<16x64xbf16>
    %13 = arith.maximumf %11, %12 : vector<16x64xbf16>
    %c0_8 = arith.constant 0 : index
    %c0_9 = arith.constant 0 : index
    %14 = vector.load %arg6[%c0_8, %c0_9] : memref<64x128xbf16, #tpu.memory_space<vmem>>, vector<64x128xbf16>
    %cst_10 = arith.constant dense<0.000000e+00> : vector<16x128xf32>
    %15 = tpu.matmul %13, %14, %cst_10 {dimension_numbers = #tpu.dot_dimension_numbers<[1], [0], [0], [1], [0, 0, 1, 1], [], []>} : vector<16x64xbf16>, vector<64x128xbf16>, vector<16x128xf32> -> vector<16x128xf32>
    %16 = arith.truncf %15 : vector<16x128xf32> to vector<16x128xbf16>
    %c0_11 = arith.constant 0 : index
    %c0_12 = arith.constant 0 : index
    %17 = vector.load %arg7[%c0_11, %c0_12] : memref<1x128xbf16, #tpu.memory_space<vmem>>, vector<1x128xbf16>
    %18 = vector.broadcast %17 : vector<1x128xbf16> to vector<16x128xbf16>
    %19 = arith.addf %16, %18 : vector<16x128xbf16>
    %cst_13 = arith.constant 0.000000e+00 : bf16
    %20 = vector.broadcast %cst_13 : bf16 to vector<16x128xbf16>
    %21 = arith.maximumf %19, %20 : vector<16x128xbf16>
    %c0_14 = arith.constant 0 : index
    %c0_15 = arith.constant 0 : index
    %22 = vector.load %arg8[%c0_14, %c0_15] : memref<128x256xbf16, #tpu.memory_space<vmem>>, vector<128x256xbf16>
    %cst_16 = arith.constant dense<0.000000e+00> : vector<16x256xf32>
    %23 = tpu.matmul %21, %22, %cst_16 {dimension_numbers = #tpu.dot_dimension_numbers<[1], [0], [0], [1], [0, 0, 1, 1], [], []>} : vector<16x128xbf16>, vector<128x256xbf16>, vector<16x256xf32> -> vector<16x256xf32>
    %24 = vector.shape_cast %23 : vector<16x256xf32> to vector<1x16x256xf32>
    %c0_17 = arith.constant 0 : index
    %c0_18 = arith.constant 0 : index
    %25 = vector.load %arg17[%c0_17, %c0_18] : memref<1x256xf32, #tpu.memory_space<vmem>>, vector<1x256xf32>
    %cst_19 = arith.constant dense<0xFF800000> : vector<1x256xf32>
    %26 = vector.multi_reduction <maximumf>, %24, %cst_19 [1] : vector<1x16x256xf32> to vector<1x256xf32>
    %27 = arith.maximumf %25, %26 : vector<1x256xf32>
    %c0_20 = arith.constant 0 : index
    %c0_21 = arith.constant 0 : index
    %28 = vector.load %arg17[%c0_20, %c0_21] : memref<1x256xf32, #tpu.memory_space<vmem>>, vector<1x256xf32>
    tpu.vector_store %arg17[%c0_20, %c0_21], %27 {strides = array<i32>} : memref<1x256xf32, #tpu.memory_space<vmem>>, vector<1x256xf32>,
    %c0_i32_22 = arith.constant 0 : i32
    %29 = arith.cmpi eq, %arg1, %c0_i32_22 : i32
    %30 = arith.extui %29 : i1 to i32
    %c0_i32_23 = arith.constant 0 : i32
    %31 = arith.cmpi ne, %30, %c0_i32_23 : i32
    scf.if %31 {
      %c0_24 = arith.constant 0 : index
      %c0_25 = arith.constant 0 : index
      %32 = vector.load %arg17[%c0_24, %c0_25] : memref<1x256xf32, #tpu.memory_space<vmem>>, vector<1x256xf32>
      %c0_26 = arith.constant 0 : index
      %c0_27 = arith.constant 0 : index
      %33 = vector.load %arg9[%c0_26, %c0_27] : memref<1x256xf32, #tpu.memory_space<vmem>>, vector<1x256xf32>
      %34 = arith.addf %32, %33 : vector<1x256xf32>
      %cst_28 = arith.constant 0.000000e+00 : f32
      %35 = vector.broadcast %cst_28 : f32 to vector<1x256xf32>
      %36 = arith.maximumf %34, %35 : vector<1x256xf32>
      %37 = arith.truncf %36 : vector<1x256xf32> to vector<1x256xbf16>
      %c0_29 = arith.constant 0 : index
      %c0_30 = arith.constant 0 : index
      %38 = vector.load %arg10[%c0_29, %c0_30] : memref<256x256xbf16, #tpu.memory_space<vmem>>, vector<256x256xbf16>
      %cst_31 = arith.constant dense<0.000000e+00> : vector<1x256xf32>
      %39 = tpu.matmul %37, %38, %cst_31 {dimension_numbers = #tpu.dot_dimension_numbers<[1], [0], [0], [1], [0, 0, 1, 1], [], []>} : vector<1x256xbf16>, vector<256x256xbf16>, vector<1x256xf32> -> vector<1x256xf32>
      %c0_32 = arith.constant 0 : index
      %c0_33 = arith.constant 0 : index
      %40 = vector.load %arg11[%c0_32, %c0_33] : memref<1x256xf32, #tpu.memory_space<vmem>>, vector<1x256xf32>
      %41 = arith.addf %39, %40 : vector<1x256xf32>
      %cst_34 = arith.constant 0.000000e+00 : f32
      %42 = vector.broadcast %cst_34 : f32 to vector<1x256xf32>
      %43 = arith.maximumf %41, %42 : vector<1x256xf32>
      %c0_35 = arith.constant 0 : index
      %c0_36 = arith.constant 0 : index
      %c0_37 = arith.constant 0 : index
      %44 = vector.load %arg3[%c0_35, %c0_36, %c0_37] : memref<1x1x8xf32, #tpu.memory_space<vmem>>, vector<1x1x8xf32>
      %45 = vector.shape_cast %44 : vector<1x1x8xf32> to vector<1x8xf32>
      %46 = arith.truncf %45 : vector<1x8xf32> to vector<1x8xbf16>
      %c0_38 = arith.constant 0 : index
      %c0_39 = arith.constant 0 : index
      %47 = vector.load %arg12[%c0_38, %c0_39] : memref<8x64xbf16, #tpu.memory_space<vmem>>, vector<8x64xbf16>
      %cst_40 = arith.constant dense<0.000000e+00> : vector<1x64xf32>
      %48 = tpu.matmul %46, %47, %cst_40 {dimension_numbers = #tpu.dot_dimension_numbers<[1], [0], [0], [1], [0, 0, 1, 1], [], []>} : vector<1x8xbf16>, vector<8x64xbf16>, vector<1x64xf32> -> vector<1x64xf32>
      %c0_41 = arith.constant 0 : index
      %c0_42 = arith.constant 0 : index
      %49 = vector.load %arg13[%c0_41, %c0_42] : memref<1x64xf32, #tpu.memory_space<vmem>>, vector<1x64xf32>
      %50 = arith.addf %48, %49 : vector<1x64xf32>
      %cst_43 = arith.constant 0.000000e+00 : f32
      %51 = vector.broadcast %cst_43 : f32 to vector<1x64xf32>
      %52 = arith.maximumf %50, %51 : vector<1x64xf32>
      %53 = arith.truncf %52 : vector<1x64xf32> to vector<1x64xbf16>
      %c0_44 = arith.constant 0 : index
      %c0_45 = arith.constant 0 : index
      %54 = vector.load %arg14[%c0_44, %c0_45] : memref<64x128xbf16, #tpu.memory_space<vmem>>, vector<64x128xbf16>
      %cst_46 = arith.constant dense<0.000000e+00> : vector<1x128xf32>
      %55 = tpu.matmul %53, %54, %cst_46 {dimension_numbers = #tpu.dot_dimension_numbers<[1], [0], [0], [1], [0, 0, 1, 1], [], []>} : vector<1x64xbf16>, vector<64x128xbf16>, vector<1x128xf32> -> vector<1x128xf32>
      %c0_47 = arith.constant 0 : index
      %c0_48 = arith.constant 0 : index
      %56 = vector.load %arg15[%c0_47, %c0_48] : memref<1x128xf32, #tpu.memory_space<vmem>>, vector<1x128xf32>
      %57 = arith.addf %55, %56 : vector<1x128xf32>
      %58 = vector.shape_cast %43 : vector<1x256xf32> to vector<1x1x256xf32>
      %c0_49 = arith.constant 0 : index
      %c0_50 = arith.constant 0 : index
      %c0_51 = arith.constant 0 : index
      %59 = vector.load %arg16[%c0_49, %c0_50, %c0_51] : memref<1x1x384xf32, #tpu.memory_space<vmem>>, vector<1x1x256xf32>
      tpu.vector_store %arg16[%c0_49, %c0_50, %c0_51], %58 {strides = array<i32>} : memref<1x1x384xf32, #tpu.memory_space<vmem>>, vector<1x1x256xf32>,
      %60 = vector.shape_cast %57 : vector<1x128xf32> to vector<1x1x128xf32>
      %c0_52 = arith.constant 0 : index
      %c0_53 = arith.constant 0 : index
      %c256 = arith.constant 256 : index
      %61 = vector.load %arg16[%c0_52, %c0_53, %c256] : memref<1x1x384xf32, #tpu.memory_space<vmem>>, vector<1x1x128xf32>
      tpu.vector_store %arg16[%c0_52, %c0_53, %c256], %60 {strides = array<i32>} : memref<1x1x384xf32, #tpu.memory_space<vmem>>, vector<1x1x128xf32>,
    } else {
    }
    return
  }
  func.func @transform_0(%arg0: i32, %arg1: i32) -> (i32, i32, i32) {
    %c0_i32 = arith.constant 0 : i32
    %c0_i32_0 = arith.constant 0 : i32
    return %arg0, %arg1, %c0_i32 : i32, i32, i32
  }
  func.func @transform_1(%arg0: i32, %arg1: i32) -> (i32, i32, i32) {
    %c0_i32 = arith.constant 0 : i32
    %c0_i32_0 = arith.constant 0 : i32
    %c0_i32_1 = arith.constant 0 : i32
    return %arg0, %c0_i32, %c0_i32_0 : i32, i32, i32
  }
  func.func @transform_2(%arg0: i32, %arg1: i32) -> (i32, i32) {
    %c0_i32 = arith.constant 0 : i32
    %c0_i32_0 = arith.constant 0 : i32
    %c0_i32_1 = arith.constant 0 : i32
    return %c0_i32, %c0_i32_0 : i32, i32
  }
  func.func @transform_3(%arg0: i32, %arg1: i32) -> (i32, i32) {
    %c0_i32 = arith.constant 0 : i32
    %c0_i32_0 = arith.constant 0 : i32
    %c0_i32_1 = arith.constant 0 : i32
    return %c0_i32, %c0_i32_0 : i32, i32
  }
  func.func @transform_4(%arg0: i32, %arg1: i32) -> (i32, i32) {
    %c0_i32 = arith.constant 0 : i32
    %c0_i32_0 = arith.constant 0 : i32
    %c0_i32_1 = arith.constant 0 : i32
    return %c0_i32, %c0_i32_0 : i32, i32
  }
  func.func @transform_5(%arg0: i32, %arg1: i32) -> (i32, i32) {
    %c0_i32 = arith.constant 0 : i32
    %c0_i32_0 = arith.constant 0 : i32
    %c0_i32_1 = arith.constant 0 : i32
    return %c0_i32, %c0_i32_0 : i32, i32
  }
  func.func @transform_6(%arg0: i32, %arg1: i32) -> (i32, i32) {
    %c0_i32 = arith.constant 0 : i32
    %c0_i32_0 = arith.constant 0 : i32
    %c0_i32_1 = arith.constant 0 : i32
    return %c0_i32, %c0_i32_0 : i32, i32
  }
  func.func @transform_7(%arg0: i32, %arg1: i32) -> (i32, i32) {
    %c0_i32 = arith.constant 0 : i32
    %c0_i32_0 = arith.constant 0 : i32
    %c0_i32_1 = arith.constant 0 : i32
    return %c0_i32, %c0_i32_0 : i32, i32
  }
  func.func @transform_8(%arg0: i32, %arg1: i32) -> (i32, i32) {
    %c0_i32 = arith.constant 0 : i32
    %c0_i32_0 = arith.constant 0 : i32
    %c0_i32_1 = arith.constant 0 : i32
    return %c0_i32, %c0_i32_0 : i32, i32
  }
  func.func @transform_9(%arg0: i32, %arg1: i32) -> (i32, i32) {
    %c0_i32 = arith.constant 0 : i32
    %c0_i32_0 = arith.constant 0 : i32
    %c0_i32_1 = arith.constant 0 : i32
    return %c0_i32, %c0_i32_0 : i32, i32
  }
  func.func @transform_10(%arg0: i32, %arg1: i32) -> (i32, i32) {
    %c0_i32 = arith.constant 0 : i32
    %c0_i32_0 = arith.constant 0 : i32
    %c0_i32_1 = arith.constant 0 : i32
    return %c0_i32, %c0_i32_0 : i32, i32
  }
  func.func @transform_11(%arg0: i32, %arg1: i32) -> (i32, i32) {
    %c0_i32 = arith.constant 0 : i32
    %c0_i32_0 = arith.constant 0 : i32
    %c0_i32_1 = arith.constant 0 : i32
    return %c0_i32, %c0_i32_0 : i32, i32
  }
  func.func @transform_12(%arg0: i32, %arg1: i32) -> (i32, i32) {
    %c0_i32 = arith.constant 0 : i32
    %c0_i32_0 = arith.constant 0 : i32
    %c0_i32_1 = arith.constant 0 : i32
    return %c0_i32, %c0_i32_0 : i32, i32
  }
  func.func @transform_13(%arg0: i32, %arg1: i32) -> (i32, i32) {
    %c0_i32 = arith.constant 0 : i32
    %c0_i32_0 = arith.constant 0 : i32
    %c0_i32_1 = arith.constant 0 : i32
    return %c0_i32, %c0_i32_0 : i32, i32
  }
  func.func @transform_14(%arg0: i32, %arg1: i32) -> (i32, i32, i32) {
    %c0_i32 = arith.constant 0 : i32
    %c0_i32_0 = arith.constant 0 : i32
    %c0_i32_1 = arith.constant 0 : i32
    return %arg0, %c0_i32, %c0_i32_0 : i32, i32, i32
  }
}

</mosaic_0001>

<llo_original>
// kernel: tpu_custom_call.1
$region0: #{tpu_custom_call.1}
  #allocation0 [shape = 'u32[]', space=smem, size = 0x4, offset = 0x4, fixed_abs, tag = 'smem constant byte address 0x4 - core index']
  #allocation1 [shape = 'u32[144,128]{1,0:T(1,128)}', space=vmem, size = 0x12000, scoped, tag = 'internal scratch']
  #allocation2 [shape = 'f32[1,256]{1,0:T(1,128)}', space=vmem, size = 0x400, scoped, tag = 'scratch operand']
  %s0 = inlined_call_operand.vmem [shape: f32[2,16,3], index: 0, kind: input, shape index: {}]
  %s1 = inlined_call_operand.hbm [shape: f32[2,1,8], index: 1, kind: input, shape index: {}]
  %s2 = inlined_call_operand.hbm [shape: bf16[3,64], index: 2, kind: input, shape index: {}]
  %s3 = inlined_call_operand.hbm [shape: bf16[1,64], index: 3, kind: input, shape index: {}]
  %s4 = inlined_call_operand.vmem [shape: bf16[64,128], index: 4, kind: input, shape index: {}]
  %s5 = inlined_call_operand.hbm [shape: bf16[1,128], index: 5, kind: input, shape index: {}]
  %s6 = inlined_call_operand.hbm [shape: bf16[128,256], index: 6, kind: input, shape index: {}]
  %s7 = inlined_call_operand.hbm [shape: f32[1,256], index: 7, kind: input, shape index: {}]
  %s8 = inlined_call_operand.hbm [shape: bf16[256,256], index: 8, kind: input, shape index: {}]
  %s9 = inlined_call_operand.vmem [shape: f32[1,256], index: 9, kind: input, shape index: {}]
  %s10 = inlined_call_operand.vmem [shape: bf16[8,64], index: 10, kind: input, shape index: {}]
  %s11 = inlined_call_operand.vmem [shape: f32[1,64], index: 11, kind: input, shape index: {}]
  %s12 = inlined_call_operand.vmem [shape: bf16[64,128], index: 12, kind: input, shape index: {}]
  %s13 = inlined_call_operand.vmem [shape: f32[1,128], index: 13, kind: input, shape index: {}]
  %s14 = inlined_call_operand.hbm [shape: f32[2,1,384], index: 14, kind: output, shape index: {}]
  %s15 = sld [smem:[#allocation0]]
  $region125: #{tpu_custom_call.1} parent=0
    _
  %s17 = ssub.s32 1, %s15
  %s18 = scalar_select 0, %s17, %s15
  $region1: #{tpu_custom_call.1} parent=0
    #allocation3 [shape = 'u8[1024]{0}', space=vmem, size = 0x400, scoped, tag = 'input window, operand 1']
    #allocation4 [shape = 's32[2]{0}', space=sflag, size = 0x8, scoped, tag = 'scoped memory for tpu_custom_call.1']
    #allocation5 [shape = 's32[2]{0}', space=sflag, size = 0x8, scoped, tag = 'scoped memory for tpu_custom_call.1']
    #allocation6 [shape = 'u8[1024]{0}', space=vmem, size = 0x400, scoped, tag = 'input window, operand 2, single buffered']
    #allocation7 [shape = 's32[1]{0}', space=sflag, size = 0x4, scoped, tag = 'scoped memory for tpu_custom_call.1']
    #allocation8 [shape = 'u8[512]{0}', space=vmem, size = 0x400, scoped, tag = 'input window, operand 3, single buffered']
    #allocation9 [shape = 'u8[512]{0}', space=vmem, size = 0x400, scoped, tag = 'input window, operand 5, single buffered']
    #allocation10 [shape = 's32[1]{0}', space=sflag, size = 0x4, scoped, tag = 'scoped memory for tpu_custom_call.1']
    #allocation11 [shape = 'u8[65536]{0}', space=vmem, size = 0x10000, scoped, tag = 'input window, operand 6, single buffered']
    #allocation12 [shape = 'u8[1024]{0}', space=vmem, size = 0x400, scoped, tag = 'input window, operand 7, single buffered']
    #allocation13 [shape = 's32[1]{0}', space=sflag, size = 0x4, scoped, tag = 'scoped memory for tpu_custom_call.1']
    #allocation14 [shape = 'u8[131072]{0}', space=vmem, size = 0x20000, scoped, tag = 'input window, operand 8, single buffered']
    #allocation15 [shape = 'u8[3072]{0}', space=vmem, size = 0xc00, scoped, tag = 'output window, operand 0']
    %19 = vsyncpa [#allocation4], 0
    %s20 = scalar_lea.sflag [#allocation4], 1
    %21 = vsyncpa %s20, 0
    %22 = vsyncpa [#allocation7], 0
    %23 = vsyncpa [#allocation10], 0
    %24 = vsyncpa [#allocation13], 0
    %25 = vsyncpa [#allocation5], 0
    %s26 = scalar_lea.sflag [#allocation5], 1
    %27 = vsyncpa %s26, 0
    loop: start=0, step=1, limit=4
    $region2: #{tpu_custom_call.1} parent=1 // loop_pre_header
      _
    $region3: #{tpu_custom_call.1} parent=1 // loop_header
      %s29 = sphi 0, %s33
      %p30 = scmp.ge.s32.totalorder %s29, 4
      %s36 = sphi 0, %s48
      %s37 = sphi 0, %s44
      %s38 = sphi 0, %s36
      %s39 = sphi 0, %s37
      %s40 = sphi 0, %s38
      %s41 = sphi 0, %s39
      %s53 = sphi 0, %s55
      %s56 = sphi 0, %s53
      %s57 = sphi 0, %s56
      %s73 = sphi 0, %s57
      %s79 = sphi 0, %s81
      %s82 = sphi 0, %s79
      %s83 = sphi 0, %s82
      %s99 = sphi 0, %s83
      %s103 = sphi 0, %s103
      %s105 = sphi 0, %s103
      %s106 = sphi 0, %s105
      %s120 = sphi 0, %s106
      %s124 = sphi 0, %s124
      %s126 = sphi 0, %s124
      %s127 = sphi 0, %s126
      %s141 = sphi 0, %s127
      %s145 = sphi 0, %s145
      %s147 = sphi 0, %s145
      %s148 = sphi 0, %s147
      %s162 = sphi 0, %s148
      %s166 = sphi 0, %s166
      %s168 = sphi 0, %s166
      %s169 = sphi 0, %s168
      %s183 = sphi 0, %s169
      %s187 = sphi 0, %s187
      %s189 = sphi 0, %s187
      %s190 = sphi 0, %s189
      %s204 = sphi 0, %s190
      %s208 = sphi 0, %s208
      %s210 = sphi 0, %s208
      %s211 = sphi 0, %s210
      %s225 = sphi 0, %s211
      %s229 = sphi 0, %s229
      %s231 = sphi 0, %s229
      %s232 = sphi 0, %s231
      %s246 = sphi 0, %s232
      %s250 = sphi 0, %s250
      %s252 = sphi 0, %s250
      %s253 = sphi 0, %s252
      %s267 = sphi 0, %s253
      %s271 = sphi 0, %s271
      %s273 = sphi 0, %s271
      %s274 = sphi 0, %s273
      %s288 = sphi 0, %s274
      %s292 = sphi 0, %s292
      %s294 = sphi 0, %s292
      %s295 = sphi 0, %s294
      %s309 = sphi 0, %s295
      %s313 = sphi 0, %s313
      %s315 = sphi 0, %s313
      %s316 = sphi 0, %s315
      %s330 = sphi 0, %s316
      %s334 = sphi 0, %s334
      %s336 = sphi 0, %s334
      %s337 = sphi 0, %s336
      %s351 = sphi 0, %s337
      %s357 = sphi 0, %s359
      %s360 = sphi 0, %s357
      %s361 = sphi 0, %s360
      %s377 = sphi 0, %s361
    $region4: #{tpu_custom_call.1} parent=1 // loop_header_branch
      %32 = sbr.rel (%p30) target = $region8
    $region5: #{tpu_custom_call.1} parent=1 // loop_body
      %s34 = ssub.s32 %s29, 1
      %s35 = ssub.s32 %s29, 2
      %s42 = sadd.s32 1, %s37
      %p43 = scmp.ge.s32.totalorder %s42, 1
      %s44 = scalar_select %p43, 0, %s42
      %s45 = sadd.s32 1, %s36
      %s46 = scalar_select %p43, %s45, %s36
      %p47 = scmp.ge.s32.totalorder %s46, 2
      %s48 = scalar_select %p47, 0, %s46
      %s49 = ssub.s32 %s36, %s48
      %s50 = ssub.s32 %s37, %s44
      %s51 = sor.u32 %s49, %s50
      %p52 = scmp.eq.s32.totalorder %s51, 0
      %s54 = sadd.s32 %s53, 1
      %s55 = scalar_select %p52, %s53, %s54
      %p58 = pneg %p52
      %p59 = scmp.eq.s32.totalorder %s29, 1
      %p60 = por %p58, %p59
      %p61 = scmp.ne.s32.totalorder %s53, %s56
      %p62 = scmp.eq.s32.totalorder %s29, 0
      %p63 = por %p61, %p62
      %p64 = scmp.ne.s32.totalorder %s53, %s56
      %p65 = scmp.eq.s32.totalorder %s34, 1
      %p66 = por %p64, %p65
      %p67 = scmp.ne.s32.totalorder %s56, %s57
      %p68 = scmp.eq.s32.totalorder %s34, 0
      %p69 = por %p67, %p68
      %p70 = scmp.ne.s32.totalorder %s56, %s57
      %p71 = scmp.eq.s32.totalorder %s35, 1
      %p72 = por %p70, %p71
      %p74 = scmp.ne.s32.totalorder %s57, %s73
      %p75 = scmp.eq.s32.totalorder %s35, 0
      %p76 = por %p74, %p75
      %s77 = ssub.s32 %s36, %s48
      %p78 = scmp.eq.s32.totalorder %s77, 0
      %s80 = sadd.s32 %s79, 1
      %s81 = scalar_select %p78, %s79, %s80
      %p84 = pneg %p78
      %p85 = scmp.eq.s32.totalorder %s29, 1
      %p86 = por %p84, %p85
      %p87 = scmp.ne.s32.totalorder %s79, %s82
      %p88 = scmp.eq.s32.totalorder %s29, 0
      %p89 = por %p87, %p88
      %p90 = scmp.ne.s32.totalorder %s79, %s82
      %p91 = scmp.eq.s32.totalorder %s34, 1
      %p92 = por %p90, %p91
      %p93 = scmp.ne.s32.totalorder %s82, %s83
      %p94 = scmp.eq.s32.totalorder %s34, 0
      %p95 = por %p93, %p94
      %p96 = scmp.ne.s32.totalorder %s82, %s83
      %p97 = scmp.eq.s32.totalorder %s35, 1
      %p98 = por %p96, %p97
      %p100 = scmp.ne.s32.totalorder %s83, %s99
      %p101 = scmp.eq.s32.totalorder %s35, 0
      %p102 = por %p100, %p101
      %s104 = sadd.s32 %s103, 1
      %p107 = scmp.eq.s32.totalorder %s29, 1
      %p108 = scmp.ne.s32.totalorder %s103, %s105
      %p109 = scmp.eq.s32.totalorder %s29, 0
      %p110 = por %p108, %p109
      %p111 = scmp.ne.s32.totalorder %s103, %s105
      %p112 = scmp.eq.s32.totalorder %s34, 1
      %p113 = por %p111, %p112
      %p114 = scmp.ne.s32.totalorder %s105, %s106
      %p115 = scmp.eq.s32.totalorder %s34, 0
      %p116 = por %p114, %p115
      %p117 = scmp.ne.s32.totalorder %s105, %s106
      %p118 = scmp.eq.s32.totalorder %s35, 1
      %p119 = por %p117, %p118
      %p121 = scmp.ne.s32.totalorder %s106, %s120
      %p122 = scmp.eq.s32.totalorder %s35, 0
      %p123 = por %p121, %p122
      %s125 = sadd.s32 %s124, 1
      %p128 = scmp.eq.s32.totalorder %s29, 1
      %p129 = scmp.ne.s32.totalorder %s124, %s126
      %p130 = scmp.eq.s32.totalorder %s29, 0
      %p131 = por %p129, %p130
      %p132 = scmp.ne.s32.totalorder %s124, %s126
      %p133 = scmp.eq.s32.totalorder %s34, 1
      %p134 = por %p132, %p133
      %p135 = scmp.ne.s32.totalorder %s126, %s127
      %p136 = scmp.eq.s32.totalorder %s34, 0
      %p137 = por %p135, %p136
      %p138 = scmp.ne.s32.totalorder %s126, %s127
      %p139 = scmp.eq.s32.totalorder %s35, 1
      %p140 = por %p138, %p139
      %p142 = scmp.ne.s32.totalorder %s127, %s141
      %p143 = scmp.eq.s32.totalorder %s35, 0
      %p144 = por %p142, %p143
      %s146 = sadd.s32 %s145, 1
      %p149 = scmp.eq.s32.totalorder %s29, 1
      %p150 = scmp.ne.s32.totalorder %s145, %s147
      %p151 = scmp.eq.s32.totalorder %s29, 0
      %p152 = por %p150, %p151
      %p153 = scmp.ne.s32.totalorder %s145, %s147
      %p154 = scmp.eq.s32.totalorder %s34, 1
      %p155 = por %p153, %p154
      %p156 = scmp.ne.s32.totalorder %s147, %s148
      %p157 = scmp.eq.s32.totalorder %s34, 0
      %p158 = por %p156, %p157
      %p159 = scmp.ne.s32.totalorder %s147, %s148
      %p160 = scmp.eq.s32.totalorder %s35, 1
      %p161 = por %p159, %p160
      %p163 = scmp.ne.s32.totalorder %s148, %s162
      %p164 = scmp.eq.s32.totalorder %s35, 0
      %p165 = por %p163, %p164
      %s167 = sadd.s32 %s166, 1
      %p170 = scmp.eq.s32.totalorder %s29, 1
      %p171 = scmp.ne.s32.totalorder %s166, %s168
      %p172 = scmp.eq.s32.totalorder %s29, 0
      %p173 = por %p171, %p172
      %p174 = scmp.ne.s32.totalorder %s166, %s168
      %p175 = scmp.eq.s32.totalorder %s34, 1
      %p176 = por %p174, %p175
      %p177 = scmp.ne.s32.totalorder %s168, %s169
      %p178 = scmp.eq.s32.totalorder %s34, 0
      %p179 = por %p177, %p178
      %p180 = scmp.ne.s32.totalorder %s168, %s169
      %p181 = scmp.eq.s32.totalorder %s35, 1
      %p182 = por %p180, %p181
      %p184 = scmp.ne.s32.totalorder %s169, %s183
      %p185 = scmp.eq.s32.totalorder %s35, 0
      %p186 = por %p184, %p185
      %s188 = sadd.s32 %s187, 1
      %p191 = scmp.eq.s32.totalorder %s29, 1
      %p192 = scmp.ne.s32.totalorder %s187, %s189
      %p193 = scmp.eq.s32.totalorder %s29, 0
      %p194 = por %p192, %p193
      %p195 = scmp.ne.s32.totalorder %s187, %s189
      %p196 = scmp.eq.s32.totalorder %s34, 1
      %p197 = por %p195, %p196
      %p198 = scmp.ne.s32.totalorder %s189, %s190
      %p199 = scmp.eq.s32.totalorder %s34, 0
      %p200 = por %p198, %p199
      %p201 = scmp.ne.s32.totalorder %s189, %s190
      %p202 = scmp.eq.s32.totalorder %s35, 1
      %p203 = por %p201, %p202
      %p205 = scmp.ne.s32.totalorder %s190, %s204
      %p206 = scmp.eq.s32.totalorder %s35, 0
      %p207 = por %p205, %p206
      %s209 = sadd.s32 %s208, 1
      %p212 = scmp.eq.s32.totalorder %s29, 1
      %p213 = scmp.ne.s32.totalorder %s208, %s210
      %p214 = scmp.eq.s32.totalorder %s29, 0
      %p215 = por %p213, %p214
      %p216 = scmp.ne.s32.totalorder %s208, %s210
      %p217 = scmp.eq.s32.totalorder %s34, 1
      %p218 = por %p216, %p217
      %p219 = scmp.ne.s32.totalorder %s210, %s211
      %p220 = scmp.eq.s32.totalorder %s34, 0
      %p221 = por %p219, %p220
      %p222 = scmp.ne.s32.totalorder %s210, %s211
      %p223 = scmp.eq.s32.totalorder %s35, 1
      %p224 = por %p222, %p223
      %p226 = scmp.ne.s32.totalorder %s211, %s225
      %p227 = scmp.eq.s32.totalorder %s35, 0
      %p228 = por %p226, %p227
      %s230 = sadd.s32 %s229, 1
      %p233 = scmp.eq.s32.totalorder %s29, 1
      %p234 = scmp.ne.s32.totalorder %s229, %s231
      %p235 = scmp.eq.s32.totalorder %s29, 0
      %p236 = por %p234, %p235
      %p237 = scmp.ne.s32.totalorder %s229, %s231
      %p238 = scmp.eq.s32.totalorder %s34, 1
      %p239 = por %p237, %p238
      %p240 = scmp.ne.s32.totalorder %s231, %s232
      %p241 = scmp.eq.s32.totalorder %s34, 0
      %p242 = por %p240, %p241
      %p243 = scmp.ne.s32.totalorder %s231, %s232
      %p244 = scmp.eq.s32.totalorder %s35, 1
      %p245 = por %p243, %p244
      %p247 = scmp.ne.s32.totalorder %s232, %s246
      %p248 = scmp.eq.s32.totalorder %s35, 0
      %p249 = por %p247, %p248
      %s251 = sadd.s32 %s250, 1
      %p254 = scmp.eq.s32.totalorder %s29, 1
      %p255 = scmp.ne.s32.totalorder %s250, %s252
      %p256 = scmp.eq.s32.totalorder %s29, 0
      %p257 = por %p255, %p256
      %p258 = scmp.ne.s32.totalorder %s250, %s252
      %p259 = scmp.eq.s32.totalorder %s34, 1
      %p260 = por %p258, %p259
      %p261 = scmp.ne.s32.totalorder %s252, %s253
      %p262 = scmp.eq.s32.totalorder %s34, 0
      %p263 = por %p261, %p262
      %p264 = scmp.ne.s32.totalorder %s252, %s253
      %p265 = scmp.eq.s32.totalorder %s35, 1
      %p266 = por %p264, %p265
      %p268 = scmp.ne.s32.totalorder %s253, %s267
      %p269 = scmp.eq.s32.totalorder %s35, 0
      %p270 = por %p268, %p269
      %s272 = sadd.s32 %s271, 1
      %p275 = scmp.eq.s32.totalorder %s29, 1
      %p276 = scmp.ne.s32.totalorder %s271, %s273
      %p277 = scmp.eq.s32.totalorder %s29, 0
      %p278 = por %p276, %p277
      %p279 = scmp.ne.s32.totalorder %s271, %s273
      %p280 = scmp.eq.s32.totalorder %s34, 1
      %p281 = por %p279, %p280
      %p282 = scmp.ne.s32.totalorder %s273, %s274
      %p283 = scmp.eq.s32.totalorder %s34, 0
      %p284 = por %p282, %p283
      %p285 = scmp.ne.s32.totalorder %s273, %s274
      %p286 = scmp.eq.s32.totalorder %s35, 1
      %p287 = por %p285, %p286
      %p289 = scmp.ne.s32.totalorder %s274, %s288
      %p290 = scmp.eq.s32.totalorder %s35, 0
      %p291 = por %p289, %p290
      %s293 = sadd.s32 %s292, 1
      %p296 = scmp.eq.s32.totalorder %s29, 1
      %p297 = scmp.ne.s32.totalorder %s292, %s294
      %p298 = scmp.eq.s32.totalorder %s29, 0
      %p299 = por %p297, %p298
      %p300 = scmp.ne.s32.totalorder %s292, %s294
      %p301 = scmp.eq.s32.totalorder %s34, 1
      %p302 = por %p300, %p301
      %p303 = scmp.ne.s32.totalorder %s294, %s295
      %p304 = scmp.eq.s32.totalorder %s34, 0
      %p305 = por %p303, %p304
      %p306 = scmp.ne.s32.totalorder %s294, %s295
      %p307 = scmp.eq.s32.totalorder %s35, 1
      %p308 = por %p306, %p307
      %p310 = scmp.ne.s32.totalorder %s295, %s309
      %p311 = scmp.eq.s32.totalorder %s35, 0
      %p312 = por %p310, %p311
      %s314 = sadd.s32 %s313, 1
      %p317 = scmp.eq.s32.totalorder %s29, 1
      %p318 = scmp.ne.s32.totalorder %s313, %s315
      %p319 = scmp.eq.s32.totalorder %s29, 0
      %p320 = por %p318, %p319
      %p321 = scmp.ne.s32.totalorder %s313, %s315
      %p322 = scmp.eq.s32.totalorder %s34, 1
      %p323 = por %p321, %p322
      %p324 = scmp.ne.s32.totalorder %s315, %s316
      %p325 = scmp.eq.s32.totalorder %s34, 0
      %p326 = por %p324, %p325
      %p327 = scmp.ne.s32.totalorder %s315, %s316
      %p328 = scmp.eq.s32.totalorder %s35, 1
      %p329 = por %p327, %p328
      %p331 = scmp.ne.s32.totalorder %s316, %s330
      %p332 = scmp.eq.s32.totalorder %s35, 0
      %p333 = por %p331, %p332
      %s335 = sadd.s32 %s334, 1
      %p338 = scmp.eq.s32.totalorder %s29, 1
      %p339 = scmp.ne.s32.totalorder %s334, %s336
      %p340 = scmp.eq.s32.totalorder %s29, 0
      %p341 = por %p339, %p340
      %p342 = scmp.ne.s32.totalorder %s334, %s336
      %p343 = scmp.eq.s32.totalorder %s34, 1
      %p344 = por %p342, %p343
      %p345 = scmp.ne.s32.totalorder %s336, %s337
      %p346 = scmp.eq.s32.totalorder %s34, 0
      %p347 = por %p345, %p346
      %p348 = scmp.ne.s32.totalorder %s336, %s337
      %p349 = scmp.eq.s32.totalorder %s35, 1
      %p350 = por %p348, %p349
      %p352 = scmp.ne.s32.totalorder %s337, %s351
      %p353 = scmp.eq.s32.totalorder %s35, 0
      %p354 = por %p352, %p353
      %s355 = ssub.s32 %s36, %s48
      %p356 = scmp.eq.s32.totalorder %s355, 0
      %s358 = sadd.s32 %s357, 1
      %s359 = scalar_select %p356, %s357, %s358
      %p362 = pneg %p356
      %p363 = scmp.eq.s32.totalorder %s29, 1
      %p364 = por %p362, %p363
      %p365 = scmp.ne.s32.totalorder %s357, %s360
      %p366 = scmp.eq.s32.totalorder %s29, 0
      %p367 = por %p365, %p366
      %p368 = scmp.ne.s32.totalorder %s357, %s360
      %p369 = scmp.eq.s32.totalorder %s34, 1
      %p370 = por %p368, %p369
      %p371 = scmp.ne.s32.totalorder %s360, %s361
      %p372 = scmp.eq.s32.totalorder %s34, 0
      %p373 = por %p371, %p372
      %p374 = scmp.ne.s32.totalorder %s360, %s361
      %p375 = scmp.eq.s32.totalorder %s35, 1
      %p376 = por %p374, %p375
      %p378 = scmp.ne.s32.totalorder %s361, %s377
      %p379 = scmp.eq.s32.totalorder %s35, 0
      %p380 = por %p378, %p379
      %p381 = scmp.le.s32.totalorder 1, %s29
      %p382 = scmp.lt.s32.totalorder %s29, 3
      %p383 = pnand %p381, %p382
      %p384 = pneg %p383
      // Predicated region
      $region9: #{tpu_custom_call.1} parent=5 // pred_check
        _
      $region10: #{tpu_custom_call.1} parent=5 // pred_check_branch
        %386 = sbr.rel (%p383) target = $region12
      $region11: #{tpu_custom_call.1} parent=5 // pred_region
        %s387 = ssub.s32 %s29, 1
        // Predicated region
        $region13: #{tpu_custom_call.1} parent=11 // pred_check
          %p388 = pneg %p116
        $region14: #{tpu_custom_call.1} parent=11 // pred_check_branch
          %390 = sbr.rel (%p388) target = $region16
        $region15: #{tpu_custom_call.1} parent=11 // pred_region
          %s392 = ssub.s32 32, 32
          %393 = vsyncadd [#allocation7], %s392
          %s395 = sshll.u32 [#allocation6], 4
          %s396 = int_to_ptr.vmem [resolvable:$true] %s395
          %398 = dma.hbm_to_vmem [thread:$0]  %s2, 32, %s396, [#allocation7]
        $region16: #{tpu_custom_call.1} parent=11 // pred_fallthru
          _
        // Predicated region
        $region17: #{tpu_custom_call.1} parent=11 // pred_check
          %p399 = pneg %p137
        $region18: #{tpu_custom_call.1} parent=11 // pred_check_branch
          %401 = sbr.rel (%p399) target = $region20
        $region19: #{tpu_custom_call.1} parent=11 // pred_region
          %s403 = ssub.s32 16, 16
          %404 = vsyncadd [#allocation7], %s403
          %s406 = sshll.u32 [#allocation8], 4
          %s407 = int_to_ptr.vmem [resolvable:$true] %s406
          %409 = dma.hbm_to_vmem [thread:$0]  %s3, 16, %s407, [#allocation7]
        $region20: #{tpu_custom_call.1} parent=11 // pred_fallthru
          _
        // Predicated region
        $region21: #{tpu_custom_call.1} parent=11 // pred_check
          %p410 = pneg %p158
        $region22: #{tpu_custom_call.1} parent=11 // pred_check_branch
          %412 = sbr.rel (%p410) target = $region24
        $region23: #{tpu_custom_call.1} parent=11 // pred_region
          _
        $region24: #{tpu_custom_call.1} parent=11 // pred_fallthru
          _
        // Predicated region
        $region25: #{tpu_custom_call.1} parent=11 // pred_check
          %p413 = pneg %p179
        $region26: #{tpu_custom_call.1} parent=11 // pred_check_branch
          %415 = sbr.rel (%p413) target = $region28
        $region27: #{tpu_custom_call.1} parent=11 // pred_region
          %s417 = ssub.s32 16, 16
          %418 = vsyncadd [#allocation10], %s417
          %s420 = sshll.u32 [#allocation9], 4
          %s421 = int_to_ptr.vmem [resolvable:$true] %s420
          %423 = dma.hbm_to_vmem [thread:$0]  %s5, 16, %s421, [#allocation10]
        $region28: #{tpu_custom_call.1} parent=11 // pred_fallthru
          _
        // Predicated region
        $region29: #{tpu_custom_call.1} parent=11 // pred_check
          %p424 = pneg %p200
        $region30: #{tpu_custom_call.1} parent=11 // pred_check_branch
          %426 = sbr.rel (%p424) target = $region32
        $region31: #{tpu_custom_call.1} parent=11 // pred_region
          %s428 = ssub.s32 2048, 2048
          %429 = vsyncadd [#allocation10], %s428
          %s430 = sshll.u32 [#allocation11], 4
          %s431 = int_to_ptr.vmem [resolvable:$true] %s430
          %436 = dma.hbm_to_vmem [thread:$0]  %s6, 2048, %s431, [#allocation10], 128, 128, 8
        $region32: #{tpu_custom_call.1} parent=11 // pred_fallthru
          _
        // Predicated region
        $region33: #{tpu_custom_call.1} parent=11 // pred_check
          %p437 = pneg %p221
        $region34: #{tpu_custom_call.1} parent=11 // pred_check_branch
          %439 = sbr.rel (%p437) target = $region36
        $region35: #{tpu_custom_call.1} parent=11 // pred_region
          %s441 = ssub.s32 32, 32
          %442 = vsyncadd [#allocation13], %s441
          %s444 = sshll.u32 [#allocation12], 4
          %s445 = int_to_ptr.vmem [resolvable:$true] %s444
          %447 = dma.hbm_to_vmem [thread:$0]  %s7, 32, %s445, [#allocation13]
        $region36: #{tpu_custom_call.1} parent=11 // pred_fallthru
          _
        // Predicated region
        $region37: #{tpu_custom_call.1} parent=11 // pred_check
          %p448 = pneg %p242
        $region38: #{tpu_custom_call.1} parent=11 // pred_check_branch
          %450 = sbr.rel (%p448) target = $region40
        $region39: #{tpu_custom_call.1} parent=11 // pred_region
          %s452 = ssub.s32 4096, 4096
          %453 = vsyncadd [#allocation13], %s452
          %s454 = sshll.u32 [#allocation14], 4
          %s455 = int_to_ptr.vmem [resolvable:$true] %s454
          %460 = dma.hbm_to_vmem [thread:$0]  %s8, 4096, %s455, [#allocation13], 128, 128, 8
        $region40: #{tpu_custom_call.1} parent=11 // pred_fallthru
          _
        // Predicated region
        $region41: #{tpu_custom_call.1} parent=11 // pred_check
          %p461 = pneg %p263
        $region42: #{tpu_custom_call.1} parent=11 // pred_check_branch
          %463 = sbr.rel (%p461) target = $region44
        $region43: #{tpu_custom_call.1} parent=11 // pred_region
          _
        $region44: #{tpu_custom_call.1} parent=11 // pred_fallthru
          _
        // Predicated region
        $region45: #{tpu_custom_call.1} parent=11 // pred_check
          %p464 = pneg %p284
        $region46: #{tpu_custom_call.1} parent=11 // pred_check_branch
          %466 = sbr.rel (%p464) target = $region48
        $region47: #{tpu_custom_call.1} parent=11 // pred_region
          _
        $region48: #{tpu_custom_call.1} parent=11 // pred_fallthru
          _
        // Predicated region
        $region49: #{tpu_custom_call.1} parent=11 // pred_check
          %p467 = pneg %p305
        $region50: #{tpu_custom_call.1} parent=11 // pred_check_branch
          %469 = sbr.rel (%p467) target = $region52
        $region51: #{tpu_custom_call.1} parent=11 // pred_region
          _
        $region52: #{tpu_custom_call.1} parent=11 // pred_fallthru
          _
        // Predicated region
        $region53: #{tpu_custom_call.1} parent=11 // pred_check
          %p470 = pneg %p326
        $region54: #{tpu_custom_call.1} parent=11 // pred_check_branch
          %472 = sbr.rel (%p470) target = $region56
        $region55: #{tpu_custom_call.1} parent=11 // pred_region
          _
        $region56: #{tpu_custom_call.1} parent=11 // pred_fallthru
          _
        // Predicated region
        $region57: #{tpu_custom_call.1} parent=11 // pred_check
          %p473 = pneg %p347
        $region58: #{tpu_custom_call.1} parent=11 // pred_check_branch
          %475 = sbr.rel (%p473) target = $region60
        $region59: #{tpu_custom_call.1} parent=11 // pred_region
          _
        $region60: #{tpu_custom_call.1} parent=11 // pred_fallthru
          _
      $region12: #{tpu_custom_call.1} parent=5 // pred_fallthru
        _
      %p476 = scmp.lt.s32.totalorder %s29, 2
      // Predicated region
      $region61: #{tpu_custom_call.1} parent=5 // pred_check
        %p477 = pneg %p476
      $region62: #{tpu_custom_call.1} parent=5 // pred_check_branch
        %479 = sbr.rel (%p477) target = $region64
      $region63: #{tpu_custom_call.1} parent=5 // pred_region
        // Predicated region
        $region65: #{tpu_custom_call.1} parent=63 // pred_check
          %p480 = pneg %p63
        $region66: #{tpu_custom_call.1} parent=63 // pred_check_branch
          %482 = sbr.rel (%p480) target = $region68
        $region67: #{tpu_custom_call.1} parent=63 // pred_region
          %s483 = smul.u32 2, %s37
          %p484 = scmp.lt.s32.totalorder %s36, 1
          %s485 = scalar_select %p484, %s36, 1
          %p486 = scmp.lt.s32.totalorder %s483, 1
          %s487 = scalar_select %p486, %s483, 1
          %s488 = smul.addr %s485, 2
          %s489 = sadd.s32 %s487, %s488
          %s490 = smul.addr %s489, 8
          %s491 = scalar_lea.vmem %s0, %s490
          %s492 = smul.u32 2, %s37
        $region68: #{tpu_custom_call.1} parent=63 // pred_fallthru
          _
        // Predicated region
        $region69: #{tpu_custom_call.1} parent=63 // pred_check
          %p493 = pneg %p89
        $region70: #{tpu_custom_call.1} parent=63 // pred_check_branch
          %495 = sbr.rel (%p493) target = $region72
        $region71: #{tpu_custom_call.1} parent=63 // pred_region
          %s496 = sand.u32 %s79, 1
          %s497 = scalar_lea.sflag [#allocation4], %s496
          %s498 = sand.u32 %s79, 1
          %s499 = scalar_lea.vmem [#allocation3], %s498
          %s501 = ssub.s32 16, 16
          %502 = vsyncadd %s497, %s501
          %s503 = smul.addr %s36, 16
          %s504 = scalar_lea.hbm %s1, %s503
          %s506 = sshll.u32 %s499, 4
          %s507 = int_to_ptr.vmem [resolvable:$true] %s506
          %509 = dma.hbm_to_vmem [thread:$0]  %s504, 16, %s507, %s497
        $region72: #{tpu_custom_call.1} parent=63 // pred_fallthru
          _
      $region64: #{tpu_custom_call.1} parent=5 // pred_fallthru
        _
      %p510 = scmp.le.s32.totalorder 1, %s29
      %p511 = scmp.lt.s32.totalorder %s29, 3
      %p512 = pnand %p510, %p511
      %p513 = pneg %p512
      // Predicated region
      $region73: #{tpu_custom_call.1} parent=5 // pred_check
        _
      $region74: #{tpu_custom_call.1} parent=5 // pred_check_branch
        %515 = sbr.rel (%p512) target = $region76
      $region75: #{tpu_custom_call.1} parent=5 // pred_region
        %s516 = ssub.s32 %s29, 1
        %s517 = sand.u32 %s82, 1
        %s518 = scalar_lea.sflag [#allocation4], %s517
        %s519 = sand.u32 %s82, 1
        %s520 = scalar_lea.vmem [#allocation3], %s519
        // Predicated region
        $region77: #{tpu_custom_call.1} parent=75 // pred_check
          %p521 = pneg %p95
        $region78: #{tpu_custom_call.1} parent=75 // pred_check_branch
          %523 = sbr.rel (%p521) target = $region80
        $region79: #{tpu_custom_call.1} parent=75 // pred_region
          %524 = dma.done %s518, 16
        $region80: #{tpu_custom_call.1} parent=75 // pred_fallthru
          _
        // Predicated region
        $region81: #{tpu_custom_call.1} parent=75 // pred_check
          %p525 = pneg %p116
        $region82: #{tpu_custom_call.1} parent=75 // pred_check_branch
          %527 = sbr.rel (%p525) target = $region84
        $region83: #{tpu_custom_call.1} parent=75 // pred_region
          %528 = dma.done [#allocation7], 32
        $region84: #{tpu_custom_call.1} parent=75 // pred_fallthru
          _
        // Predicated region
        $region85: #{tpu_custom_call.1} parent=75 // pred_check
          %p529 = pneg %p137
        $region86: #{tpu_custom_call.1} parent=75 // pred_check_branch
          %531 = sbr.rel (%p529) target = $region88
        $region87: #{tpu_custom_call.1} parent=75 // pred_region
          %532 = dma.done [#allocation7], 16
        $region88: #{tpu_custom_call.1} parent=75 // pred_fallthru
          _
        // Predicated region
        $region89: #{tpu_custom_call.1} parent=75 // pred_check
          %p533 = pneg %p179
        $region90: #{tpu_custom_call.1} parent=75 // pred_check_branch
          %535 = sbr.rel (%p533) target = $region92
        $region91: #{tpu_custom_call.1} parent=75 // pred_region
          %536 = dma.done [#allocation10], 16
        $region92: #{tpu_custom_call.1} parent=75 // pred_fallthru
          _
        // Predicated region
        $region93: #{tpu_custom_call.1} parent=75 // pred_check
          %p537 = pneg %p200
        $region94: #{tpu_custom_call.1} parent=75 // pred_check_branch
          %539 = sbr.rel (%p537) target = $region96
        $region95: #{tpu_custom_call.1} parent=75 // pred_region
          %540 = dma.done [#allocation10], 2048
        $region96: #{tpu_custom_call.1} parent=75 // pred_fallthru
          _
        // Predicated region
        $region97: #{tpu_custom_call.1} parent=75 // pred_check
          %p541 = pneg %p221
        $region98: #{tpu_custom_call.1} parent=75 // pred_check_branch
          %543 = sbr.rel (%p541) target = $region100
        $region99: #{tpu_custom_call.1} parent=75 // pred_region
          %544 = dma.done [#allocation13], 32
        $region100: #{tpu_custom_call.1} parent=75 // pred_fallthru
          _
        // Predicated region
        $region101: #{tpu_custom_call.1} parent=75 // pred_check
          %p545 = pneg %p242
        $region102: #{tpu_custom_call.1} parent=75 // pred_check_branch
          %547 = sbr.rel (%p545) target = $region104
        $region103: #{tpu_custom_call.1} parent=75 // pred_region
          %548 = dma.done [#allocation13], 4096
        $region104: #{tpu_custom_call.1} parent=75 // pred_fallthru
          _
        %s549 = smul.u32 2, %s39
        %p550 = scmp.lt.s32.totalorder %s38, 1
        %s551 = scalar_select %p550, %s38, 1
        %p552 = scmp.lt.s32.totalorder %s549, 1
        %s553 = scalar_select %p552, %s549, 1
        %s554 = smul.addr %s551, 2
        %s555 = sadd.s32 %s553, %s554
        %s556 = smul.addr %s555, 8
        %s557 = scalar_lea.vmem %s0, %s556
        %p558 = pneg %p69
        %p559 = pneg %p66
        %s560 = sand.u32 %s82, 1
        %s561 = scalar_lea.sflag [#allocation4], %s560
        %s562 = sand.u32 %s82, 1
        %s563 = scalar_lea.vmem [#allocation3], %s562
        %p564 = pneg %p95
        %p565 = pneg %p92
        %p566 = pneg %p116
        %p567 = pneg %p113
        %p568 = pneg %p137
        %p569 = pneg %p134
        %p570 = pneg %p158
        %p571 = pneg %p155
        %p572 = pneg %p179
        %p573 = pneg %p176
        %p574 = pneg %p200
        %p575 = pneg %p197
        %p576 = pneg %p221
        %p577 = pneg %p218
        %p578 = pneg %p242
        %p579 = pneg %p239
        %p580 = pneg %p263
        %p581 = pneg %p260
        %p582 = pneg %p284
        %p583 = pneg %p281
        %p584 = pneg %p305
        %p585 = pneg %p302
        %p586 = pneg %p326
        %p587 = pneg %p323
        %p588 = pneg %p347
        %p589 = pneg %p344
        %p590 = pneg %p373
        %p591 = pneg %p370
        %s592 = sand.u32 %s360, 1
        %s593 = scalar_lea.sflag [#allocation5], %s592
        %s594 = sand.u32 %s360, 1
        %s595 = smul.addr %s594, 3
        %s596 = scalar_lea.vmem [#allocation15], %s595
        %s597 = smul.u32 2, %s39
        %p598 = scmp.lt.s32.totalorder %s38, 1
        %s599 = scalar_select %p598, %s38, 1
        %p600 = scmp.lt.s32.totalorder %s597, 1
        %s601 = scalar_select %p600, %s597, 1
        %s602 = smul.addr %s599, 2
        %s603 = sadd.s32 %s601, %s602
        %s604 = smul.addr %s603, 8
        %s605 = scalar_lea.vmem %s0, %s604
        %s606 = smul.u32 2, %s39
        %p608 = scmp.eq.s32.totalorder %s39, 0
        // Predicated region
        $region105: #{tpu_custom_call.1} parent=75 // pred_check
          %p609 = pneg %p608
        $region106: #{tpu_custom_call.1} parent=75 // pred_check_branch
          %611 = sbr.rel (%p609) target = $region108
        $region107: #{tpu_custom_call.1} parent=75 // pred_region
          %v612 = vlaneseq
          %vm613 = vcmp.ge.s32.totalorder %v612, 0
          %vm614 = vcmp.lt.s32.totalorder %v612, 256
          %vm615 = vmand %vm613, %vm614
          %616 = vst.msk [vmem:[#allocation2] sm:$0x3] %vm615, -inf
        $region108: #{tpu_custom_call.1} parent=75 // pred_fallthru
          _
        %v617 = vld [vmem:[%s605] sm:$0xff]
        %v618 = vld [vmem:[%s605 + $0x8] sm:$0xff]
        %v619 = vpack.c.bf16 %v618, %v617
        %v620 = vld [vmem:[#allocation6] sm:$0x3]
        %vm621 = vcmask 23552
        %v623 = vsel %vm621, %v619, 0
        %vm625 = vcmask 1040384
        %vm626 = vcmask 1041408
        %v627 = vsel %vm625, 4294967295, 65535
        %v628 = vsel %vm626, %v627, 0
        %v630 = vand.u32 %v620, %v628
        %632 = vmatprep.subr.bf16.mxu0 0
        %633 = vmatpush1.bf16.msra.mxu0 %v630
        %634 = vmatprep.subr.bf16.mxu0 0
        %635 = vmatpush1.bf16.msra.mxu0 0
        %636 = vmatprep.subr.bf16.mxu0 0
        %637 = vmatpush1.bf16.msra.mxu0 0
        %638 = vmatprep.subr.bf16.mxu0 0
        %639 = vmatpush1.bf16.msra.mxu0 0
        %640 = vmatprep.subr.bf16.mxu0 0
        %641 = vmatpush1.bf16.msra.mxu0 0
        %642 = vmatprep.subr.bf16.mxu0 0
        %643 = vmatpush1.bf16.msra.mxu0 0
        %644 = vmatprep.subr.bf16.mxu0 0
        %645 = vmatpush1.bf16.msra.mxu0 0
        %646 = vmatprep.subr.bf16.mxu0 0
        %647 = vmatpush1.bf16.msra.mxu0 0
        %648 = vmatprep.subr.bf16.mxu0 0
        %649 = vmatpush1.bf16.msra.mxu0 0
        %650 = vmatprep.subr.bf16.mxu0 0
        %651 = vmatpush1.bf16.msra.mxu0 0
        %652 = vmatprep.subr.bf16.mxu0 0
        %653 = vmatpush1.bf16.msra.mxu0 0
        %654 = vmatprep.subr.bf16.mxu0 0
        %655 = vmatpush1.bf16.msra.mxu0 0
        %656 = vmatprep.subr.bf16.mxu0 0
        %657 = vmatpush1.bf16.msra.mxu0 0
        %658 = vmatprep.subr.bf16.mxu0 0
        %659 = vmatpush1.bf16.msra.mxu0 0
        %660 = vmatprep.subr.bf16.mxu0 0
        %661 = vmatpush1.bf16.msra.mxu0 0
        %662 = vmatprep.subr.bf16.mxu0 0
        %663 = vmatpush1.bf16.msra.mxu0 0
        %664 = vmatprep.mubr.bf16.mxu0 0
        %665 = vmatmul.mubr.bf16.gmra.mrb[0].mxu0 %v623
        %v666 = vpop.f32.mrb[0].mxu0
        %v667 = vadd.f32 0.0, %v666
        %v668 = vpop.f32.mrb[0].mxu0
        %v669 = vpop.f32.mrb[0].mxu0
        %v670 = vadd.f32 0.0, %v669
        %v671 = vpop.f32.mrb[0].mxu0
        %672 = vdwg.mxu0
        %v673 = vpack.c.bf16 %v670, %v667
        %v674 = vld [vmem:[#allocation8] sm:$0x1]
        %v676 = vpack.i.b16 %v674, %v674
        %v678 = vlaneseq
        %v679 = vshrl.u32 %v678, 7
        %v680 = vsub.s32 0, %v679
        %v681 = vrot.slane %v676, %v680
        %v682 = vadd.bf16 %v673, %v681
        %v683 = vmax.bf16 %v682, 0
        %v684 = vld [vmem:[%s4] sm:$0xf]
        %v685 = vld [vmem:[%s4 + $0x4] sm:$0xf]
        %v686 = vld [vmem:[%s4 + $0x8] sm:$0xf]
        %v687 = vld [vmem:[%s4 + $0xc] sm:$0xf]
        %v688 = vld [vmem:[%s4 + $0x10] sm:$0xf]
        %v689 = vld [vmem:[%s4 + $0x14] sm:$0xf]
        %v690 = vld [vmem:[%s4 + $0x18] sm:$0xf]
        %v691 = vld [vmem:[%s4 + $0x1c] sm:$0xf]
        %v700 = vunpack.c.l.b16 %v684
        %v701 = vunpack.c.l.b16 %v685
        %v702 = vunpack.c.l.b16 %v686
        %v703 = vunpack.c.l.b16 %v687
        %v704 = vunpack.c.l.b16 %v688
        %v705 = vunpack.c.l.b16 %v689
        %v706 = vunpack.c.l.b16 %v690
        %v707 = vunpack.c.l.b16 %v691
        %v708 = vpack.c.b16 %v701, %v700
        %v709 = vpack.c.b16 %v703, %v702
        %v710 = vpack.c.b16 %v705, %v704
        %v711 = vpack.c.b16 %v707, %v706
        %vm716 = vcmask 523264
        %v718 = vsel %vm716, %v683, 0
        %720 = vmatprep.subr.bf16.mxu0 0
        %721 = vmatpush1.bf16.msra.mxu0 %v708
        %722 = vmatprep.subr.bf16.mxu0 0
        %723 = vmatpush1.bf16.msra.mxu0 %v709
        %724 = vmatprep.subr.bf16.mxu0 0
        %725 = vmatpush1.bf16.msra.mxu0 %v710
        %726 = vmatprep.subr.bf16.mxu0 0
        %727 = vmatpush1.bf16.msra.mxu0 %v711
        %728 = vmatprep.subr.bf16.mxu0 0
        %729 = vmatpush1.bf16.msra.mxu0 0
        %730 = vmatprep.subr.bf16.mxu0 0
        %731 = vmatpush1.bf16.msra.mxu0 0
        %732 = vmatprep.subr.bf16.mxu0 0
        %733 = vmatpush1.bf16.msra.mxu0 0
        %734 = vmatprep.subr.bf16.mxu0 0
        %735 = vmatpush1.bf16.msra.mxu0 0
        %736 = vmatprep.subr.bf16.mxu0 0
        %737 = vmatpush1.bf16.msra.mxu0 0
        %738 = vmatprep.subr.bf16.mxu0 0
        %739 = vmatpush1.bf16.msra.mxu0 0
        %740 = vmatprep.subr.bf16.mxu0 0
        %741 = vmatpush1.bf16.msra.mxu0 0
        %742 = vmatprep.subr.bf16.mxu0 0
        %743 = vmatpush1.bf16.msra.mxu0 0
        %744 = vmatprep.subr.bf16.mxu0 0
        %745 = vmatpush1.bf16.msra.mxu0 0
        %746 = vmatprep.subr.bf16.mxu0 0
        %747 = vmatpush1.bf16.msra.mxu0 0
        %748 = vmatprep.subr.bf16.mxu0 0
        %749 = vmatpush1.bf16.msra.mxu0 0
        %750 = vmatprep.subr.bf16.mxu0 0
        %751 = vmatpush1.bf16.msra.mxu0 0
        %752 = vmatprep.mubr.bf16.mxu0 0
        %753 = vmatmul.mubr.bf16.gmra.mrb[0].mxu0 %v718
        %v754 = vpop.f32.mrb[0].mxu0
        %v755 = vadd.f32 0.0, %v754
        %v756 = vpop.f32.mrb[0].mxu0
        %v757 = vpop.f32.mrb[0].mxu0
        %v758 = vadd.f32 0.0, %v757
        %v759 = vpop.f32.mrb[0].mxu0
        %760 = vdwg.mxu0
        %v761 = vpack.c.bf16 %v758, %v755
        %v762 = vld [vmem:[#allocation9] sm:$0x1]
        %v764 = vpack.i.b16 %v762, %v762
        %v766 = vlaneseq
        %v767 = vshrl.u32 %v766, 7
        %v768 = vsub.s32 0, %v767
        %v769 = vrot.slane %v764, %v768
        %v770 = vadd.bf16 %v761, %v769
        %v771 = vmax.bf16 %v770, 0
        %v772 = vld [vmem:[#allocation11] sm:$0xff]
        %v773 = vld [vmem:[#allocation11 + $0x8] sm:$0xff]
        %v774 = vld [vmem:[#allocation11 + $0x10] sm:$0xff]
        %v775 = vld [vmem:[#allocation11 + $0x18] sm:$0xff]
        %v776 = vld [vmem:[#allocation11 + $0x20] sm:$0xff]
        %v777 = vld [vmem:[#allocation11 + $0x28] sm:$0xff]
        %v778 = vld [vmem:[#allocation11 + $0x30] sm:$0xff]
        %v779 = vld [vmem:[#allocation11 + $0x38] sm:$0xff]
        %v780 = vld [vmem:[#allocation11 + $0x40] sm:$0xff]
        %v781 = vld [vmem:[#allocation11 + $0x48] sm:$0xff]
        %v782 = vld [vmem:[#allocation11 + $0x50] sm:$0xff]
        %v783 = vld [vmem:[#allocation11 + $0x58] sm:$0xff]
        %v784 = vld [vmem:[#allocation11 + $0x60] sm:$0xff]
        %v785 = vld [vmem:[#allocation11 + $0x68] sm:$0xff]
        %v786 = vld [vmem:[#allocation11 + $0x70] sm:$0xff]
        %v787 = vld [vmem:[#allocation11 + $0x78] sm:$0xff]
        %v804 = vunpack.c.l.b16 %v772
        %v805 = vunpack.c.h.b16 %v772
        %v806 = vunpack.c.l.b16 %v773
        %v807 = vunpack.c.h.b16 %v773
        %v808 = vunpack.c.l.b16 %v774
        %v809 = vunpack.c.h.b16 %v774
        %v810 = vunpack.c.l.b16 %v775
        %v811 = vunpack.c.h.b16 %v775
        %v812 = vunpack.c.l.b16 %v776
        %v813 = vunpack.c.h.b16 %v776
        %v814 = vunpack.c.l.b16 %v777
        %v815 = vunpack.c.h.b16 %v777
        %v816 = vunpack.c.l.b16 %v778
        %v817 = vunpack.c.h.b16 %v778
        %v818 = vunpack.c.l.b16 %v779
        %v819 = vunpack.c.h.b16 %v779
        %v820 = vunpack.c.l.b16 %v780
        %v821 = vunpack.c.h.b16 %v780
        %v822 = vunpack.c.l.b16 %v781
        %v823 = vunpack.c.h.b16 %v781
        %v824 = vunpack.c.l.b16 %v782
        %v825 = vunpack.c.h.b16 %v782
        %v826 = vunpack.c.l.b16 %v783
        %v827 = vunpack.c.h.b16 %v783
        %v828 = vunpack.c.l.b16 %v784
        %v829 = vunpack.c.h.b16 %v784
        %v830 = vunpack.c.l.b16 %v785
        %v831 = vunpack.c.h.b16 %v785
        %v832 = vunpack.c.l.b16 %v786
        %v833 = vunpack.c.h.b16 %v786
        %v834 = vunpack.c.l.b16 %v787
        %v835 = vunpack.c.h.b16 %v787
        %v836 = vpack.c.b16 %v806, %v804
        %v837 = vpack.c.b16 %v807, %v805
        %v838 = vpack.c.b16 %v810, %v808
        %v839 = vpack.c.b16 %v811, %v809
        %v840 = vpack.c.b16 %v814, %v812
        %v841 = vpack.c.b16 %v815, %v813
        %v842 = vpack.c.b16 %v818, %v816
        %v843 = vpack.c.b16 %v819, %v817
        %v844 = vpack.c.b16 %v822, %v820
        %v845 = vpack.c.b16 %v823, %v821
        %v846 = vpack.c.b16 %v826, %v824
        %v847 = vpack.c.b16 %v827, %v825
        %v848 = vpack.c.b16 %v830, %v828
        %v849 = vpack.c.b16 %v831, %v829
        %v850 = vpack.c.b16 %v834, %v832
        %v851 = vpack.c.b16 %v835, %v833
        %868 = vmatprep.subr.bf16.mxu0 %v837
        %869 = vmatpush1.bf16.msra.mxu0 %v836
        %870 = vmatprep.subr.bf16.mxu0 %v839
        %871 = vmatpush1.bf16.msra.mxu0 %v838
        %872 = vmatprep.subr.bf16.mxu0 %v841
        %873 = vmatpush1.bf16.msra.mxu0 %v840
        %874 = vmatprep.subr.bf16.mxu0 %v843
        %875 = vmatpush1.bf16.msra.mxu0 %v842
        %876 = vmatprep.subr.bf16.mxu0 %v845
        %877 = vmatpush1.bf16.msra.mxu0 %v844
        %878 = vmatprep.subr.bf16.mxu0 %v847
        %879 = vmatpush1.bf16.msra.mxu0 %v846
        %880 = vmatprep.subr.bf16.mxu0 %v849
        %881 = vmatpush1.bf16.msra.mxu0 %v848
        %882 = vmatprep.subr.bf16.mxu0 %v851
        %883 = vmatpush1.bf16.msra.mxu0 %v850
        %884 = vmatprep.subr.bf16.mxu0 0
        %885 = vmatpush1.bf16.msra.mxu0 0
        %886 = vmatprep.subr.bf16.mxu0 0
        %887 = vmatpush1.bf16.msra.mxu0 0
        %888 = vmatprep.subr.bf16.mxu0 0
        %889 = vmatpush1.bf16.msra.mxu0 0
        %890 = vmatprep.subr.bf16.mxu0 0
        %891 = vmatpush1.bf16.msra.mxu0 0
        %892 = vmatprep.subr.bf16.mxu0 0
        %893 = vmatpush1.bf16.msra.mxu0 0
        %894 = vmatprep.subr.bf16.mxu0 0
        %895 = vmatpush1.bf16.msra.mxu0 0
        %896 = vmatprep.subr.bf16.mxu0 0
        %897 = vmatpush1.bf16.msra.mxu0 0
        %898 = vmatprep.subr.bf16.mxu0 0
        %899 = vmatpush1.bf16.msra.mxu0 0
        %900 = vmatprep.mubr.bf16.mxu0 0
        %901 = vmatmul.mubr.bf16.gmra.mrb[0].mxu0 %v771
        %v902 = vpop.f32.mrb[0].mxu0
        %v903 = vadd.f32 0.0, %v902
        %v904 = vpop.f32.mrb[0].mxu0
        %v905 = vadd.f32 0.0, %v904
        %v906 = vpop.f32.mrb[0].mxu0
        %v907 = vadd.f32 0.0, %v906
        %v908 = vpop.f32.mrb[0].mxu0
        %v909 = vadd.f32 0.0, %v908
        %910 = vdwg.mxu0
        %v911 = vld [vmem:[#allocation2] sm:$0x3]
        %v912 = vmax.f32 %v903, %v907
        %v913 = vrot.slane %v912, 4
        %v914 = vmax.f32 %v912, %v913
        %v915 = vrot.slane %v914, 2
        %v916 = vmax.f32 %v914, %v915
        %v917 = vrot.slane %v916, 1
        %v918 = vmax.f32 %v916, %v917
        %v919 = vmax.f32 %v905, %v909
        %v920 = vrot.slane %v919, 4
        %v921 = vmax.f32 %v919, %v920
        %v922 = vrot.slane %v921, 2
        %v923 = vmax.f32 %v921, %v922
        %v924 = vrot.slane %v923, 1
        %v925 = vmax.f32 %v923, %v924
        %v928 = vcombine.low %v918, %v925
        %v930 = vunpack.c.l.s4 1966171168
        %v931 = vunpack.c.0.s8 %v930
        %v932 = vlaneseq
        %v933 = vshrl.u32 %v932, 7
        %v934 = vsub.s32 %v931, %v933
        %v935 = vrot.slane %v928, %v934
        %v937 = vunpack.c.l.s4 1966171168
        %v938 = vunpack.c.0.s8 %v937
        %v939 = vlaneseq
        %v940 = vshrl.u32 %v939, 7
        %v941 = vsub.s32 %v938, %v940
        %v942 = vrot.slane %v935, %v941
        %v944 = vmax.f32 %v911, %v942
        %v945 = vlaneseq
        %vm946 = vcmp.ge.s32.totalorder %v945, 0
        %vm947 = vcmp.lt.s32.totalorder %v945, 256
        %vm948 = vmand %vm946, %vm947
        %949 = vst.msk [vmem:[#allocation2] sm:$0x3] %vm948, %v944
        // Predicated region
        $region109: #{tpu_custom_call.1} parent=75 // pred_check
          %p950 = pneg %p608
        $region110: #{tpu_custom_call.1} parent=75 // pred_check_branch
          %952 = sbr.rel (%p950) target = $region112
        $region111: #{tpu_custom_call.1} parent=75 // pred_region
          %v953 = vld [vmem:[#allocation2] sm:$0x3]
          %v954 = vld [vmem:[#allocation12] sm:$0x3]
          %v955 = vadd.f32 %v953, %v954
          %v956 = vmax.f32 %v955, 0.0
          %v958 = vlaneseq
          %v959 = vshrl.u32 %v958, 7
          %v960 = vsub.s32 0, %v959
          %v961 = vrot.slane %v956, %v960
          %v962 = vlaneseq
          %v963 = vshrl.u32 %v962, 7
          %v964 = vsub.s32 1, %v963
          %v965 = vrot.slane %v956, %v964
          %v968 = vpack.c.bf16 %v961, %v961
          %v969 = vpack.c.bf16 %v965, %v965
          %v970 = vld [vmem:[#allocation14] sm:$0xff]
          %v971 = vld [vmem:[#allocation14 + $0x8] sm:$0xff]
          %v972 = vld [vmem:[#allocation14 + $0x10] sm:$0xff]
          %v973 = vld [vmem:[#allocation14 + $0x18] sm:$0xff]
          %v974 = vld [vmem:[#allocation14 + $0x20] sm:$0xff]
          %v975 = vld [vmem:[#allocation14 + $0x28] sm:$0xff]
          %v976 = vld [vmem:[#allocation14 + $0x30] sm:$0xff]
          %v977 = vld [vmem:[#allocation14 + $0x38] sm:$0xff]
          %v978 = vld [vmem:[#allocation14 + $0x40] sm:$0xff]
          %v979 = vld [vmem:[#allocation14 + $0x48] sm:$0xff]
          %v980 = vld [vmem:[#allocation14 + $0x50] sm:$0xff]
          %v981 = vld [vmem:[#allocation14 + $0x58] sm:$0xff]
          %v982 = vld [vmem:[#allocation14 + $0x60] sm:$0xff]
          %v983 = vld [vmem:[#allocation14 + $0x68] sm:$0xff]
          %v984 = vld [vmem:[#allocation14 + $0x70] sm:$0xff]
          %v985 = vld [vmem:[#allocation14 + $0x78] sm:$0xff]
          %v986 = vld [vmem:[#allocation14 + $0x80] sm:$0xff]
          %v987 = vld [vmem:[#allocation14 + $0x88] sm:$0xff]
          %v988 = vld [vmem:[#allocation14 + $0x90] sm:$0xff]
          %v989 = vld [vmem:[#allocation14 + $0x98] sm:$0xff]
          %v990 = vld [vmem:[#allocation14 + $0xa0] sm:$0xff]
          %v991 = vld [vmem:[#allocation14 + $0xa8] sm:$0xff]
          %v992 = vld [vmem:[#allocation14 + $0xb0] sm:$0xff]
          %v993 = vld [vmem:[#allocation14 + $0xb8] sm:$0xff]
          %v994 = vld [vmem:[#allocation14 + $0xc0] sm:$0xff]
          %v995 = vld [vmem:[#allocation14 + $0xc8] sm:$0xff]
          %v996 = vld [vmem:[#allocation14 + $0xd0] sm:$0xff]
          %v997 = vld [vmem:[#allocation14 + $0xd8] sm:$0xff]
          %v998 = vld [vmem:[#allocation14 + $0xe0] sm:$0xff]
          %v999 = vld [vmem:[#allocation14 + $0xe8] sm:$0xff]
          %v1000 = vld [vmem:[#allocation14 + $0xf0] sm:$0xff]
          %v1001 = vld [vmem:[#allocation14 + $0xf8] sm:$0xff]
          %v1002 = vld [vmem:[%s9] sm:$0x3]
          %v1035 = vunpack.c.l.b16 %v970
          %v1036 = vunpack.c.h.b16 %v970
          %v1037 = vunpack.c.l.b16 %v971
          %v1038 = vunpack.c.h.b16 %v971
          %v1039 = vunpack.c.l.b16 %v972
          %v1040 = vunpack.c.h.b16 %v972
          %v1041 = vunpack.c.l.b16 %v973
          %v1042 = vunpack.c.h.b16 %v973
          %v1043 = vunpack.c.l.b16 %v974
          %v1044 = vunpack.c.h.b16 %v974
          %v1045 = vunpack.c.l.b16 %v975
          %v1046 = vunpack.c.h.b16 %v975
          %v1047 = vunpack.c.l.b16 %v976
          %v1048 = vunpack.c.h.b16 %v976
          %v1049 = vunpack.c.l.b16 %v977
          %v1050 = vunpack.c.h.b16 %v977
          %v1051 = vunpack.c.l.b16 %v978
          %v1052 = vunpack.c.h.b16 %v978
          %v1053 = vunpack.c.l.b16 %v979
          %v1054 = vunpack.c.h.b16 %v979
          %v1055 = vunpack.c.l.b16 %v980
          %v1056 = vunpack.c.h.b16 %v980
          %v1057 = vunpack.c.l.b16 %v981
          %v1058 = vunpack.c.h.b16 %v981
          %v1059 = vunpack.c.l.b16 %v982
          %v1060 = vunpack.c.h.b16 %v982
          %v1061 = vunpack.c.l.b16 %v983
          %v1062 = vunpack.c.h.b16 %v983
          %v1063 = vunpack.c.l.b16 %v984
          %v1064 = vunpack.c.h.b16 %v984
          %v1065 = vunpack.c.l.b16 %v985
          %v1066 = vunpack.c.h.b16 %v985
          %v1067 = vunpack.c.l.b16 %v986
          %v1068 = vunpack.c.h.b16 %v986
          %v1069 = vunpack.c.l.b16 %v987
          %v1070 = vunpack.c.h.b16 %v987
          %v1071 = vunpack.c.l.b16 %v988
          %v1072 = vunpack.c.h.b16 %v988
          %v1073 = vunpack.c.l.b16 %v989
          %v1074 = vunpack.c.h.b16 %v989
          %v1075 = vunpack.c.l.b16 %v990
          %v1076 = vunpack.c.h.b16 %v990
          %v1077 = vunpack.c.l.b16 %v991
          %v1078 = vunpack.c.h.b16 %v991
          %v1079 = vunpack.c.l.b16 %v992
          %v1080 = vunpack.c.h.b16 %v992
          %v1081 = vunpack.c.l.b16 %v993
          %v1082 = vunpack.c.h.b16 %v993
          %v1083 = vunpack.c.l.b16 %v994
          %v1084 = vunpack.c.h.b16 %v994
          %v1085 = vunpack.c.l.b16 %v995
          %v1086 = vunpack.c.h.b16 %v995
          %v1087 = vunpack.c.l.b16 %v996
          %v1088 = vunpack.c.h.b16 %v996
          %v1089 = vunpack.c.l.b16 %v997
          %v1090 = vunpack.c.h.b16 %v997
          %v1091 = vunpack.c.l.b16 %v998
          %v1092 = vunpack.c.h.b16 %v998
          %v1093 = vunpack.c.l.b16 %v999
          %v1094 = vunpack.c.h.b16 %v999
          %v1095 = vunpack.c.l.b16 %v1000
          %v1096 = vunpack.c.h.b16 %v1000
          %v1097 = vunpack.c.l.b16 %v1001
          %v1098 = vunpack.c.h.b16 %v1001
          %v1099 = vpack.c.b16 %v1037, %v1035
          %v1100 = vpack.c.b16 %v1038, %v1036
          %v1101 = vpack.c.b16 %v1041, %v1039
          %v1102 = vpack.c.b16 %v1042, %v1040
          %v1103 = vpack.c.b16 %v1045, %v1043
          %v1104 = vpack.c.b16 %v1046, %v1044
          %v1105 = vpack.c.b16 %v1049, %v1047
          %v1106 = vpack.c.b16 %v1050, %v1048
          %v1107 = vpack.c.b16 %v1053, %v1051
          %v1108 = vpack.c.b16 %v1054, %v1052
          %v1109 = vpack.c.b16 %v1057, %v1055
          %v1110 = vpack.c.b16 %v1058, %v1056
          %v1111 = vpack.c.b16 %v1061, %v1059
          %v1112 = vpack.c.b16 %v1062, %v1060
          %v1113 = vpack.c.b16 %v1065, %v1063
          %v1114 = vpack.c.b16 %v1066, %v1064
          %v1115 = vpack.c.b16 %v1069, %v1067
          %v1116 = vpack.c.b16 %v1070, %v1068
          %v1117 = vpack.c.b16 %v1073, %v1071
          %v1118 = vpack.c.b16 %v1074, %v1072
          %v1119 = vpack.c.b16 %v1077, %v1075
          %v1120 = vpack.c.b16 %v1078, %v1076
          %v1121 = vpack.c.b16 %v1081, %v1079
          %v1122 = vpack.c.b16 %v1082, %v1080
          %v1123 = vpack.c.b16 %v1085, %v1083
          %v1124 = vpack.c.b16 %v1086, %v1084
          %v1125 = vpack.c.b16 %v1089, %v1087
          %v1126 = vpack.c.b16 %v1090, %v1088
          %v1127 = vpack.c.b16 %v1093, %v1091
          %v1128 = vpack.c.b16 %v1094, %v1092
          %v1129 = vpack.c.b16 %v1097, %v1095
          %v1130 = vpack.c.b16 %v1098, %v1096
          %v1164 = vlaneseq
          %v1165 = vshrl.u32 %v1164, 7
          %v1166 = vsub.s32 0, %v1165
          %v1167 = vrot.slane %v1002, %v1166
          %v1168 = vlaneseq
          %v1169 = vshrl.u32 %v1168, 7
          %v1170 = vsub.s32 1, %v1169
          %v1171 = vrot.slane %v1002, %v1170
          %1174 = vmatprep.subr.bf16.mxu0 %v1100
          %1175 = vmatpush1.bf16.msra.mxu0 %v1099
          %1176 = vmatprep.subr.bf16.mxu0 %v1102
          %1177 = vmatpush1.bf16.msra.mxu0 %v1101
          %1178 = vmatprep.subr.bf16.mxu0 %v1104
          %1179 = vmatpush1.bf16.msra.mxu0 %v1103
          %1180 = vmatprep.subr.bf16.mxu0 %v1106
          %1181 = vmatpush1.bf16.msra.mxu0 %v1105
          %1182 = vmatprep.subr.bf16.mxu0 %v1108
          %1183 = vmatpush1.bf16.msra.mxu0 %v1107
          %1184 = vmatprep.subr.bf16.mxu0 %v1110
          %1185 = vmatpush1.bf16.msra.mxu0 %v1109
          %1186 = vmatprep.subr.bf16.mxu0 %v1112
          %1187 = vmatpush1.bf16.msra.mxu0 %v1111
          %1188 = vmatprep.subr.bf16.mxu0 %v1114
          %1189 = vmatpush1.bf16.msra.mxu0 %v1113
          %1190 = vmatprep.subr.bf16.mxu0 %v1116
          %1191 = vmatpush1.bf16.msra.mxu0 %v1115
          %1192 = vmatprep.subr.bf16.mxu0 %v1118
          %1193 = vmatpush1.bf16.msra.mxu0 %v1117
          %1194 = vmatprep.subr.bf16.mxu0 %v1120
          %1195 = vmatpush1.bf16.msra.mxu0 %v1119
          %1196 = vmatprep.subr.bf16.mxu0 %v1122
          %1197 = vmatpush1.bf16.msra.mxu0 %v1121
          %1198 = vmatprep.subr.bf16.mxu0 %v1124
          %1199 = vmatpush1.bf16.msra.mxu0 %v1123
          %1200 = vmatprep.subr.bf16.mxu0 %v1126
          %1201 = vmatpush1.bf16.msra.mxu0 %v1125
          %1202 = vmatprep.subr.bf16.mxu0 %v1128
          %1203 = vmatpush1.bf16.msra.mxu0 %v1127
          %1204 = vmatprep.subr.bf16.mxu0 %v1130
          %1205 = vmatpush1.bf16.msra.mxu0 %v1129
          %1206 = vmatprep.mubr.bf16.mxu0 %v969
          %1207 = vmatmul.mubr.bf16.gmra.mrb[0].mxu0 %v968
          %v1208 = vpop.f32.mrb[0].mxu0
          %v1209 = vadd.f32 %v1167, %v1208
          %v1210 = vpop.f32.mrb[0].mxu0
          %v1211 = vadd.f32 %v1171, %v1210
          %v1212 = vpop.f32.mrb[0].mxu0
          %v1213 = vpop.f32.mrb[0].mxu0
          %1214 = vdwg.mxu0
          %v1215 = vmax.f32 %v1209, 0.0
          %v1216 = vmax.f32 %v1211, 0.0
          %v1217 = vld [vmem:[%s520] sm:$0x1]
          %v1218 = vpack.c.bf16 %v1217, %v1217
          %v1219 = vld [vmem:[%s10] sm:$0xf]
          %v1220 = vld [vmem:[%s11] sm:$0x1]
          %vm1221 = vcmask 64512
          %v1223 = vsel %vm1221, %v1218, 0
          %vm1225 = vcmask 1043456
          %v1227 = vsel %vm1225, %v1219, 0
          %1229 = vmatprep.subr.bf16.mxu0 0
          %1230 = vmatpush1.bf16.msra.mxu0 %v1227
          %1231 = vmatprep.subr.bf16.mxu0 0
          %1232 = vmatpush1.bf16.msra.mxu0 0
          %1233 = vmatprep.subr.bf16.mxu0 0
          %1234 = vmatpush1.bf16.msra.mxu0 0
          %1235 = vmatprep.subr.bf16.mxu0 0
          %1236 = vmatpush1.bf16.msra.mxu0 0
          %1237 = vmatprep.subr.bf16.mxu0 0
          %1238 = vmatpush1.bf16.msra.mxu0 0
          %1239 = vmatprep.subr.bf16.mxu0 0
          %1240 = vmatpush1.bf16.msra.mxu0 0
          %1241 = vmatprep.subr.bf16.mxu0 0
          %1242 = vmatpush1.bf16.msra.mxu0 0
          %1243 = vmatprep.subr.bf16.mxu0 0
          %1244 = vmatpush1.bf16.msra.mxu0 0
          %1245 = vmatprep.subr.bf16.mxu0 0
          %1246 = vmatpush1.bf16.msra.mxu0 0
          %1247 = vmatprep.subr.bf16.mxu0 0
          %1248 = vmatpush1.bf16.msra.mxu0 0
          %1249 = vmatprep.subr.bf16.mxu0 0
          %1250 = vmatpush1.bf16.msra.mxu0 0
          %1251 = vmatprep.subr.bf16.mxu0 0
          %1252 = vmatpush1.bf16.msra.mxu0 0
          %1253 = vmatprep.subr.bf16.mxu0 0
          %1254 = vmatpush1.bf16.msra.mxu0 0
          %1255 = vmatprep.subr.bf16.mxu0 0
          %1256 = vmatpush1.bf16.msra.mxu0 0
          %1257 = vmatprep.subr.bf16.mxu0 0
          %1258 = vmatpush1.bf16.msra.mxu0 0
          %1259 = vmatprep.subr.bf16.mxu0 0
          %1260 = vmatpush1.bf16.msra.mxu0 0
          %1261 = vmatprep.mubr.bf16.mxu0 0
          %1262 = vmatmul.mubr.bf16.gmra.mrb[0].mxu0 %v1223
          %v1263 = vpop.f32.mrb[0].mxu0
          %v1264 = vadd.f32 %v1220, %v1263
          %v1265 = vpop.f32.mrb[0].mxu0
          %v1266 = vpop.f32.mrb[0].mxu0
          %v1267 = vpop.f32.mrb[0].mxu0
          %1268 = vdwg.mxu0
          %v1269 = vmax.f32 %v1264, 0.0
          %v1270 = vpack.c.bf16 %v1269, %v1269
          %v1271 = vld [vmem:[%s12] sm:$0xf]
          %v1272 = vld [vmem:[%s12 + $0x4] sm:$0xf]
          %v1273 = vld [vmem:[%s12 + $0x8] sm:$0xf]
          %v1274 = vld [vmem:[%s12 + $0xc] sm:$0xf]
          %v1275 = vld [vmem:[%s12 + $0x10] sm:$0xf]
          %v1276 = vld [vmem:[%s12 + $0x14] sm:$0xf]
          %v1277 = vld [vmem:[%s12 + $0x18] sm:$0xf]
          %v1278 = vld [vmem:[%s12 + $0x1c] sm:$0xf]
          %v1279 = vld [vmem:[%s13] sm:$0x1]
          %v1288 = vunpack.c.l.b16 %v1271
          %v1289 = vunpack.c.l.b16 %v1272
          %v1290 = vunpack.c.l.b16 %v1273
          %v1291 = vunpack.c.l.b16 %v1274
          %v1292 = vunpack.c.l.b16 %v1275
          %v1293 = vunpack.c.l.b16 %v1276
          %v1294 = vunpack.c.l.b16 %v1277
          %v1295 = vunpack.c.l.b16 %v1278
          %v1296 = vpack.c.b16 %v1289, %v1288
          %v1297 = vpack.c.b16 %v1291, %v1290
          %v1298 = vpack.c.b16 %v1293, %v1292
          %v1299 = vpack.c.b16 %v1295, %v1294
          %v1305 = vsel %vm716, %v1270, 0
          %1307 = vmatprep.subr.bf16.mxu0 0
          %1308 = vmatpush1.bf16.msra.mxu0 %v1296
          %1309 = vmatprep.subr.bf16.mxu0 0
          %1310 = vmatpush1.bf16.msra.mxu0 %v1297
          %1311 = vmatprep.subr.bf16.mxu0 0
          %1312 = vmatpush1.bf16.msra.mxu0 %v1298
          %1313 = vmatprep.subr.bf16.mxu0 0
          %1314 = vmatpush1.bf16.msra.mxu0 %v1299
          %1315 = vmatprep.subr.bf16.mxu0 0
          %1316 = vmatpush1.bf16.msra.mxu0 0
          %1317 = vmatprep.subr.bf16.mxu0 0
          %1318 = vmatpush1.bf16.msra.mxu0 0
          %1319 = vmatprep.subr.bf16.mxu0 0
          %1320 = vmatpush1.bf16.msra.mxu0 0
          %1321 = vmatprep.subr.bf16.mxu0 0
          %1322 = vmatpush1.bf16.msra.mxu0 0
          %1323 = vmatprep.subr.bf16.mxu0 0
          %1324 = vmatpush1.bf16.msra.mxu0 0
          %1325 = vmatprep.subr.bf16.mxu0 0
          %1326 = vmatpush1.bf16.msra.mxu0 0
          %1327 = vmatprep.subr.bf16.mxu0 0
          %1328 = vmatpush1.bf16.msra.mxu0 0
          %1329 = vmatprep.subr.bf16.mxu0 0
          %1330 = vmatpush1.bf16.msra.mxu0 0
          %1331 = vmatprep.subr.bf16.mxu0 0
          %1332 = vmatpush1.bf16.msra.mxu0 0
          %1333 = vmatprep.subr.bf16.mxu0 0
          %1334 = vmatpush1.bf16.msra.mxu0 0
          %1335 = vmatprep.subr.bf16.mxu0 0
          %1336 = vmatpush1.bf16.msra.mxu0 0
          %1337 = vmatprep.subr.bf16.mxu0 0
          %1338 = vmatpush1.bf16.msra.mxu0 0
          %1339 = vmatprep.mubr.bf16.mxu0 0
          %1340 = vmatmul.mubr.bf16.gmra.mrb[0].mxu0 %v1305
          %v1341 = vpop.f32.mrb[0].mxu0
          %v1342 = vadd.f32 %v1279, %v1341
          %v1343 = vpop.f32.mrb[0].mxu0
          %v1344 = vpop.f32.mrb[0].mxu0
          %v1345 = vpop.f32.mrb[0].mxu0
          %1346 = vdwg.mxu0
          %v1349 = vcombine.low %v1215, %v1216
          %v1351 = vunpack.c.l.s4 1966171168
          %v1352 = vunpack.c.0.s8 %v1351
          %v1353 = vlaneseq
          %v1354 = vshrl.u32 %v1353, 7
          %v1355 = vsub.s32 %v1352, %v1354
          %v1356 = vrot.slane %v1349, %v1355
          %v1358 = vunpack.c.l.s4 1966171168
          %v1359 = vunpack.c.0.s8 %v1358
          %v1360 = vlaneseq
          %v1361 = vshrl.u32 %v1360, 7
          %v1362 = vsub.s32 %v1359, %v1361
          %v1363 = vrot.slane %v1356, %v1362
          %1365 = vst.msk [vmem:[%s596] sm:$0x3] %vm948, %v1363
          %vm1366 = vcmp.lt.s32.totalorder %v945, 128
          %vm1367 = vmand %vm946, %vm1366
          %1368 = vst.msk [vmem:[%s596 + $0x2] sm:$0x1] %vm1367, %v1342
        $region112: #{tpu_custom_call.1} parent=75 // pred_fallthru
          _
        %s1369 = sand.u32 %s360, 1
        %s1370 = scalar_lea.sflag [#allocation5], %s1369
        %s1371 = sand.u32 %s360, 1
        %s1372 = smul.addr %s1371, 3
        %s1373 = scalar_lea.vmem [#allocation15], %s1372
        // Predicated region
        $region113: #{tpu_custom_call.1} parent=75 // pred_check
          %p1374 = pneg %p370
        $region114: #{tpu_custom_call.1} parent=75 // pred_check_branch
          %1376 = sbr.rel (%p1374) target = $region116
        $region115: #{tpu_custom_call.1} parent=75 // pred_region
          %s1378 = ssub.s32 48, 48
          %1379 = vsyncadd %s1370, %s1378
          %s1380 = smul.addr %s38, 3
          %s1381 = smul.addr %s1380, 16
          %s1382 = scalar_lea.hbm %s14, %s1381
          %s1384 = sshll.u32 %s1373, 4
          %s1385 = int_to_ptr.vmem [resolvable:$true] %s1384
          %1387 = dma.vmem_to_hbm [thread:$0]  %s1385, 48, %s1382, %s1370
        $region116: #{tpu_custom_call.1} parent=75 // pred_fallthru
          _
      $region76: #{tpu_custom_call.1} parent=5 // pred_fallthru
        _
      %p1388 = scmp.le.s32.totalorder 2, %s29
      // Predicated region
      $region117: #{tpu_custom_call.1} parent=5 // pred_check
        %p1389 = pneg %p1388
      $region118: #{tpu_custom_call.1} parent=5 // pred_check_branch
        %1391 = sbr.rel (%p1389) target = $region120
      $region119: #{tpu_custom_call.1} parent=5 // pred_region
        %s1392 = ssub.s32 %s29, 2
        // Predicated region
        $region121: #{tpu_custom_call.1} parent=119 // pred_check
          %p1393 = pneg %p376
        $region122: #{tpu_custom_call.1} parent=119 // pred_check_branch
          %1395 = sbr.rel (%p1393) target = $region124
        $region123: #{tpu_custom_call.1} parent=119 // pred_region
          %s1396 = sand.u32 %s361, 1
          %s1397 = scalar_lea.sflag [#allocation5], %s1396
          %s1398 = sand.u32 %s361, 1
          %s1399 = smul.addr %s1398, 3
          %s1400 = scalar_lea.vmem [#allocation15], %s1399
          %1401 = dma.done %s1397, 48
        $region124: #{tpu_custom_call.1} parent=119 // pred_fallthru
          _
      $region120: #{tpu_custom_call.1} parent=5 // pred_fallthru
        _
    $region6: #{tpu_custom_call.1} parent=1 // loop_footer
      %s33 = sadd.s32 1, %s29
    $region7: #{tpu_custom_call.1} parent=1 // loop_footer_branch
      %28 = sbr.rel target = $region3
    $region8: #{tpu_custom_call.1} parent=1 // loop_exit
      _
    %1402 = vsyncpa [#allocation4], 1
    %s1403 = scalar_lea.sflag [#allocation4], 1
    %1404 = vsyncpa %s1403, 1
    %1405 = vsyncpa [#allocation7], 1
    %1406 = vsyncpa [#allocation10], 1
    %1407 = vsyncpa [#allocation13], 1
    %1408 = vsyncpa [#allocation5], 1
    %s1409 = scalar_lea.sflag [#allocation5], 1
    %1410 = vsyncpa %s1409, 1

</llo_original>
